<compile_context>
chip_gen: v7x
topology: tpu7x:2x2x1
jax: 0.10.0
libtpu: 0.0.40
codegen_flags: <defaults>
</compile_context>

<pallas_src>
import jax
import jax.numpy as jnp
from jax.experimental import pallas as pl
from jax.experimental.pallas import tpu as pltpu


# ---------------------------------------------------------------------------
# Pallas kernels
# ---------------------------------------------------------------------------
def _conv_mm_kernel(p_ref, w_ref, o_ref):
    """(tm, 4*Cin) bf16 @ (4*Cin, 4*Cout) bf16 -> (tm, 4*Cout) f32 on the MXU."""
    o_ref[...] = jnp.dot(p_ref[...], w_ref[...],
                         preferred_element_type=jnp.float32)


def _bn_relu_kernel(x_ref, scale_ref, bias_ref, o_ref):
    """Fused per-channel affine (training-mode BatchNorm) + ReLU, lane-dense."""
    y = x_ref[...] * scale_ref[...] + bias_ref[...]
    o_ref[...] = jnp.maximum(y, 0.0).astype(o_ref.dtype)


# ---------------------------------------------------------------------------
# Pallas wrappers
# ---------------------------------------------------------------------------
def _round_up(x, m):
    return (x + m - 1) // m * m


def _row_tile(m, cap):
    """Whole array as one tile while small, else `cap` (both multiples of 8)."""
    if m <= 2 * cap:
        return _round_up(m, 8)
    return cap


def conv_matmul(patches, w_mat):
    """Row-tiled matmul, parallel grid, no cross-tile state."""
    M, K = patches.shape
    Nn = w_mat.shape[1]
    tm = _row_tile(M, cap=512)
    Mp = _round_up(M, tm)
    if Mp != M:                                   # handle remainder tiles
        patches = jnp.pad(patches, ((0, Mp - M), (0, 0)))
    y = pl.pallas_call(
        _conv_mm_kernel,
        out_shape=jax.ShapeDtypeStruct((Mp, Nn), jnp.float32),
        grid_spec=pltpu.PrefetchScalarGridSpec(
            num_scalar_prefetch=0,
            grid=(Mp // tm,),
            in_specs=[
                pl.BlockSpec((tm, K), lambda i: (i, 0)),
                pl.BlockSpec((K, Nn), lambda i: (0, 0)),
            ],
            out_specs=pl.BlockSpec((tm, Nn), lambda i: (i, 0)),
        ),
        compiler_params=pltpu.CompilerParams(
            dimension_semantics=("parallel",)),
    )(patches, w_mat)
    return y[:M]


def bn_relu(x, scale, bias, out_dtype=jnp.bfloat16):
    """Fused BatchNorm(affine) + ReLU on a lane-dense (rows, OW*C) slab."""
    R, L = x.shape
    tr = _row_tile(R, cap=1024)
    Rp = _round_up(R, tr)
    if Rp != R:
        x = jnp.pad(x, ((0, Rp - R), (0, 0)))
    y = pl.pallas_call(
        _bn_relu_kernel,
        out_shape=jax.ShapeDtypeStruct((Rp, L), out_dtype),
        grid_spec=pltpu.PrefetchScalarGridSpec(
            num_scalar_prefetch=0,
            grid=(Rp // tr,),
            in_specs=[
                pl.BlockSpec((tr, L), lambda i: (i, 0)),
                pl.BlockSpec((1, L), lambda i: (0, 0)),
                pl.BlockSpec((1, L), lambda i: (0, 0)),
            ],
            out_specs=pl.BlockSpec((tr, L), lambda i: (i, 0)),
        ),
        compiler_params=pltpu.CompilerParams(
            dimension_semantics=("parallel",)),
    )(x, scale, bias)
    return y[:R]


# ---------------------------------------------------------------------------
# Polyphase ConvTranspose2d(k=4, s=2, p=1) glue
# ---------------------------------------------------------------------------
def _polyphase_patches(x_nhwc, dtype=jnp.bfloat16):
    """Each group (g,h), g in [0,H], h in [0,W], reads the 2x2 window
    x_pad[g:g+2, h:h+2] of the 1-padded input -> K = 4*Cin patch rows."""
    N, H, W, C = x_nhwc.shape
    xp = jnp.pad(x_nhwc, ((0, 0), (1, 1), (1, 1), (0, 0))).astype(dtype)
    taps = [xp[:, dy:dy + H + 1, dx:dx + W + 1, :]
            for dy in range(2) for dx in range(2)]
    patches = jnp.concatenate(taps, axis=-1)          # (N, H+1, W+1, 4*C)
    return patches.reshape(N * (H + 1) * (W + 1), 4 * C)


def _polyphase_weight(w_torch, dtype=jnp.bfloat16):
    """(Cin, Cout, 4, 4) ConvTranspose2d weight -> (4*Cin, 4*Cout) matrix.
    Row    = (dy*2 + dx)*Cin  + cin   (2x2 input tap inside the window)
    Column = (sy*2 + sx)*Cout + cout  (2x2 output sub-pixel position;
             sy/sx = 0 -> odd output row/col 2g-1, 1 -> even row/col 2g)."""
    rows = []
    for dy in range(2):
        for dx in range(2):
            cols = []
            for sy in range(2):
                for sx in range(2):
                    ky = 2 + sy - 2 * dy
                    kx = 2 + sx - 2 * dx
                    cols.append(w_torch[:, :, ky, kx])     # (Cin, Cout)
            rows.append(jnp.concatenate(cols, axis=1))      # (Cin, 4*Cout)
    return jnp.concatenate(rows, axis=0).astype(dtype)       # (4*Cin, 4*Cout)


def _reassemble(y_group, N, H, W, Cout):
    """(N*(H+1)*(W+1), 4*Cout) group-major output -> (N, 2H, 2W, Cout)."""
    y = y_group.reshape(N, H + 1, W + 1, 2, 2, Cout)
    y = jnp.transpose(y, (0, 1, 3, 2, 4, 5))          # (N, H+1, 2, W+1, 2, C)
    y = y.reshape(N, 2 * (H + 1), 2 * (W + 1), Cout)
    return y[:, 1:2 * H + 1, 1:2 * W + 1, :]          # crop the shifted border


def deconv_layer(x_nhwc, w_torch, apply_bn_relu, eps=1e-5):
    """x_nhwc: (N,H,W,Cin); w_torch: (Cin,Cout,4,4) PyTorch ConvTranspose2d weight."""
    N, H, W, _ = x_nhwc.shape
    Cout = w_torch.shape[1]
    OH, OW = 2 * H, 2 * W

    patches = _polyphase_patches(x_nhwc)              # (M, 4*Cin) bf16
    w_mat = _polyphase_weight(w_torch)                # (4*Cin, 4*Cout) bf16
    y_group = conv_matmul(patches, w_mat)             # (M, 4*Cout) f32
    y = _reassemble(y_group, N, H, W, Cout)           # (N, OH, OW, Cout) f32

    if not apply_bn_relu:
        return y

    # Training-mode BatchNorm2d statistics over (N, OH, OW); gamma=1, beta=0.
    mean = jnp.mean(y, axis=(0, 1, 2))
    var = jnp.var(y, axis=(0, 1, 2))                  # biased var, matches BN
    scale = 1.0 / jnp.sqrt(var + eps)
    bias = -mean * scale
    # Lane-dense (N*OH, OW*Cout) layout: channel pattern repeats every Cout.
    scale_l = jnp.tile(scale, OW).reshape(1, OW * Cout)
    bias_l = jnp.tile(bias, OW).reshape(1, OW * Cout)
    y_flat = y.reshape(N * OH, OW * Cout)
    out = bn_relu(y_flat, scale_l, bias_l, out_dtype=jnp.bfloat16)
    return out.reshape(N, OH, OW, Cout)


@jax.jit
def dec_forward(x_nchw, w1, w2, w3):
    x = jnp.transpose(x_nchw, (0, 2, 3, 1))           # NCHW -> NHWC
    h = deconv_layer(x, w1, apply_bn_relu=True)       # ndf*4 -> ndf*2, 2x up
    h = deconv_layer(h, w2, apply_bn_relu=True)       # ndf*2 -> ndf,   2x up
    h = deconv_layer(h, w3, apply_bn_relu=False)      # ndf   -> 3,     2x up
    return jnp.transpose(h, (0, 3, 1, 2))             # NHWC -> NCHW


# ---------------------------------------------------------------------------
if __name__ == "__main__":
    ndf = 8
    N, H, W = 2, 8, 8                                  # dec input: (N, ndf*4, 8, 8)

    key = jax.random.PRNGKey(0)
    k1, k2, k3, kx = jax.random.split(key, 4)
    # ConvTranspose2d weight shapes: (in_channels, out_channels, 4, 4), bias=False
    w1 = jax.random.normal(k1, (ndf * 4, ndf * 2, 4, 4), jnp.float32) * 0.05
    w2 = jax.random.normal(k2, (ndf * 2, ndf, 4, 4), jnp.float32) * 0.05
    w3 = jax.random.normal(k3, (ndf, 3, 4, 4), jnp.float32) * 0.05

    x = jax.random.normal(kx, (N, ndf * 4, H, W), jnp.float32)

    out = dec_forward(x, w1, w2, w3)
    jax.block_until_ready(out)
    assert out.shape == (N, 3, 8 * H, 8 * W), out.shape
    print("KERNEL_OK")
</pallas_src>

<mosaic_0001>
module attributes {stable_mosaic.version = 11 : i64} {
  func.func @_conv_mm_kernel(%arg0: i32, %arg1: memref<168x128xbf16, #tpu.memory_space<vmem>>, %arg2: memref<128x64xbf16, #tpu.memory_space<vmem>>, %arg3: memref<168x64xf32, #tpu.memory_space<vmem>>) attributes {dimension_semantics = [#tpu.dimension_semantics<parallel>], iteration_bounds = array<i64: 1>, scalar_prefetch = 0 : i64, scratch_operands = 0 : i64, tpu.core_type = #tpu.core_type<tc>, window_params = [{transform_indices = @transform_0, window_bounds = array<i64: 168, 128>}, {pipeline_mode = #tpu.pipeline_mode<synchronous>, transform_indices = @transform_1, window_bounds = array<i64: 128, 64>}, {transform_indices = @transform_2, window_bounds = array<i64: 168, 64>}]} {
    %c0 = arith.constant 0 : index
    %c0_0 = arith.constant 0 : index
    %0 = vector.load %arg1[%c0, %c0_0] : memref<168x128xbf16, #tpu.memory_space<vmem>>, vector<168x128xbf16>
    %c0_1 = arith.constant 0 : index
    %c0_2 = arith.constant 0 : index
    %1 = vector.load %arg2[%c0_1, %c0_2] : memref<128x64xbf16, #tpu.memory_space<vmem>>, vector<128x64xbf16>
    %cst = arith.constant dense<0.000000e+00> : vector<168x64xf32>
    %2 = tpu.matmul %0, %1, %cst {dimension_numbers = #tpu.dot_dimension_numbers<[1], [0], [0], [1], [0, 0, 1, 1], [], []>} : vector<168x128xbf16>, vector<128x64xbf16>, vector<168x64xf32> -> vector<168x64xf32>
    %c0_3 = arith.constant 0 : index
    %c0_4 = arith.constant 0 : index
    %3 = vector.load %arg3[%c0_3, %c0_4] : memref<168x64xf32, #tpu.memory_space<vmem>>, vector<168x64xf32>
    tpu.vector_store %arg3[%c0_3, %c0_4], %2 {strides = array<i32>} : memref<168x64xf32, #tpu.memory_space<vmem>>, vector<168x64xf32>,
    return
  }
  func.func @transform_0(%arg0: i32) -> (i32, i32) {
    %c0_i32 = arith.constant 0 : i32
    %c0_i32_0 = arith.constant 0 : i32
    return %arg0, %c0_i32 : i32, i32
  }
  func.func @transform_1(%arg0: i32) -> (i32, i32) {
    %c0_i32 = arith.constant 0 : i32
    %c0_i32_0 = arith.constant 0 : i32
    %c0_i32_1 = arith.constant 0 : i32
    return %c0_i32, %c0_i32_0 : i32, i32
  }
  func.func @transform_2(%arg0: i32) -> (i32, i32) {
    %c0_i32 = arith.constant 0 : i32
    %c0_i32_0 = arith.constant 0 : i32
    return %arg0, %c0_i32 : i32, i32
  }
}

module attributes {stable_mosaic.version = 11 : i64} {
  func.func @_bn_relu_kernel(%arg0: i32, %arg1: memref<32x256xf32, #tpu.memory_space<vmem>>, %arg2: memref<1x256xf32, #tpu.memory_space<vmem>>, %arg3: memref<1x256xf32, #tpu.memory_space<vmem>>, %arg4: memref<32x256xbf16, #tpu.memory_space<vmem>>) attributes {dimension_semantics = [#tpu.dimension_semantics<parallel>], iteration_bounds = array<i64: 1>, scalar_prefetch = 0 : i64, scratch_operands = 0 : i64, tpu.core_type = #tpu.core_type<tc>, window_params = [{transform_indices = @transform_0, window_bounds = array<i64: 32, 256>}, {pipeline_mode = #tpu.pipeline_mode<synchronous>, transform_indices = @transform_1, window_bounds = array<i64: 1, 256>}, {pipeline_mode = #tpu.pipeline_mode<synchronous>, transform_indices = @transform_2, window_bounds = array<i64: 1, 256>}, {transform_indices = @transform_3, window_bounds = array<i64: 32, 256>}]} {
    %c0 = arith.constant 0 : index
    %c0_0 = arith.constant 0 : index
    %0 = vector.load %arg1[%c0, %c0_0] : memref<32x256xf32, #tpu.memory_space<vmem>>, vector<32x256xf32>
    %c0_1 = arith.constant 0 : index
    %c0_2 = arith.constant 0 : index
    %1 = vector.load %arg2[%c0_1, %c0_2] : memref<1x256xf32, #tpu.memory_space<vmem>>, vector<1x256xf32>
    %2 = vector.broadcast %1 : vector<1x256xf32> to vector<32x256xf32>
    %3 = arith.mulf %0, %2 : vector<32x256xf32>
    %c0_3 = arith.constant 0 : index
    %c0_4 = arith.constant 0 : index
    %4 = vector.load %arg3[%c0_3, %c0_4] : memref<1x256xf32, #tpu.memory_space<vmem>>, vector<1x256xf32>
    %5 = vector.broadcast %4 : vector<1x256xf32> to vector<32x256xf32>
    %6 = arith.addf %3, %5 : vector<32x256xf32>
    %cst = arith.constant 0.000000e+00 : f32
    %7 = vector.broadcast %cst : f32 to vector<32x256xf32>
    %8 = arith.maximumf %6, %7 : vector<32x256xf32>
    %9 = arith.truncf %8 : vector<32x256xf32> to vector<32x256xbf16>
    %c0_5 = arith.constant 0 : index
    %c0_6 = arith.constant 0 : index
    %10 = vector.load %arg4[%c0_5, %c0_6] : memref<32x256xbf16, #tpu.memory_space<vmem>>, vector<32x256xbf16>
    tpu.vector_store %arg4[%c0_5, %c0_6], %9 {strides = array<i32>} : memref<32x256xbf16, #tpu.memory_space<vmem>>, vector<32x256xbf16>,
    return
  }
  func.func @transform_0(%arg0: i32) -> (i32, i32) {
    %c0_i32 = arith.constant 0 : i32
    %c0_i32_0 = arith.constant 0 : i32
    return %arg0, %c0_i32 : i32, i32
  }
  func.func @transform_1(%arg0: i32) -> (i32, i32) {
    %c0_i32 = arith.constant 0 : i32
    %c0_i32_0 = arith.constant 0 : i32
    %c0_i32_1 = arith.constant 0 : i32
    return %c0_i32, %c0_i32_0 : i32, i32
  }
  func.func @transform_2(%arg0: i32) -> (i32, i32) {
    %c0_i32 = arith.constant 0 : i32
    %c0_i32_0 = arith.constant 0 : i32
    %c0_i32_1 = arith.constant 0 : i32
    return %c0_i32, %c0_i32_0 : i32, i32
  }
  func.func @transform_3(%arg0: i32) -> (i32, i32) {
    %c0_i32 = arith.constant 0 : i32
    %c0_i32_0 = arith.constant 0 : i32
    return %arg0, %c0_i32 : i32, i32
  }
}

module attributes {stable_mosaic.version = 11 : i64} {
  func.func @_conv_mm_kernel(%arg0: i32, %arg1: memref<584x64xbf16, #tpu.memory_space<vmem>>, %arg2: memref<64x32xbf16, #tpu.memory_space<vmem>>, %arg3: memref<584x32xf32, #tpu.memory_space<vmem>>) attributes {dimension_semantics = [#tpu.dimension_semantics<parallel>], iteration_bounds = array<i64: 1>, scalar_prefetch = 0 : i64, scratch_operands = 0 : i64, tpu.core_type = #tpu.core_type<tc>, window_params = [{transform_indices = @transform_0, window_bounds = array<i64: 584, 64>}, {pipeline_mode = #tpu.pipeline_mode<synchronous>, transform_indices = @transform_1, window_bounds = array<i64: 64, 32>}, {transform_indices = @transform_2, window_bounds = array<i64: 584, 32>}]} {
    %c0 = arith.constant 0 : index
    %c0_0 = arith.constant 0 : index
    %0 = vector.load %arg1[%c0, %c0_0] : memref<584x64xbf16, #tpu.memory_space<vmem>>, vector<584x64xbf16>
    %c0_1 = arith.constant 0 : index
    %c0_2 = arith.constant 0 : index
    %1 = vector.load %arg2[%c0_1, %c0_2] : memref<64x32xbf16, #tpu.memory_space<vmem>>, vector<64x32xbf16>
    %cst = arith.constant dense<0.000000e+00> : vector<584x32xf32>
    %2 = tpu.matmul %0, %1, %cst {dimension_numbers = #tpu.dot_dimension_numbers<[1], [0], [0], [1], [0, 0, 1, 1], [], []>} : vector<584x64xbf16>, vector<64x32xbf16>, vector<584x32xf32> -> vector<584x32xf32>
    %c0_3 = arith.constant 0 : index
    %c0_4 = arith.constant 0 : index
    %3 = vector.load %arg3[%c0_3, %c0_4] : memref<584x32xf32, #tpu.memory_space<vmem>>, vector<584x32xf32>
    tpu.vector_store %arg3[%c0_3, %c0_4], %2 {strides = array<i32>} : memref<584x32xf32, #tpu.memory_space<vmem>>, vector<584x32xf32>,
    return
  }
  func.func @transform_0(%arg0: i32) -> (i32, i32) {
    %c0_i32 = arith.constant 0 : i32
    %c0_i32_0 = arith.constant 0 : i32
    return %arg0, %c0_i32 : i32, i32
  }
  func.func @transform_1(%arg0: i32) -> (i32, i32) {
    %c0_i32 = arith.constant 0 : i32
    %c0_i32_0 = arith.constant 0 : i32
    %c0_i32_1 = arith.constant 0 : i32
    return %c0_i32, %c0_i32_0 : i32, i32
  }
  func.func @transform_2(%arg0: i32) -> (i32, i32) {
    %c0_i32 = arith.constant 0 : i32
    %c0_i32_0 = arith.constant 0 : i32
    return %arg0, %c0_i32 : i32, i32
  }
}

module attributes {stable_mosaic.version = 11 : i64} {
  func.func @_bn_relu_kernel(%arg0: i32, %arg1: memref<64x256xf32, #tpu.memory_space<vmem>>, %arg2: memref<1x256xf32, #tpu.memory_space<vmem>>, %arg3: memref<1x256xf32, #tpu.memory_space<vmem>>, %arg4: memref<64x256xbf16, #tpu.memory_space<vmem>>) attributes {dimension_semantics = [#tpu.dimension_semantics<parallel>], iteration_bounds = array<i64: 1>, scalar_prefetch = 0 : i64, scratch_operands = 0 : i64, tpu.core_type = #tpu.core_type<tc>, window_params = [{transform_indices = @transform_0, window_bounds = array<i64: 64, 256>}, {pipeline_mode = #tpu.pipeline_mode<synchronous>, transform_indices = @transform_1, window_bounds = array<i64: 1, 256>}, {pipeline_mode = #tpu.pipeline_mode<synchronous>, transform_indices = @transform_2, window_bounds = array<i64: 1, 256>}, {transform_indices = @transform_3, window_bounds = array<i64: 64, 256>}]} {
    %c0 = arith.constant 0 : index
    %c0_0 = arith.constant 0 : index
    %0 = vector.load %arg1[%c0, %c0_0] : memref<64x256xf32, #tpu.memory_space<vmem>>, vector<64x256xf32>
    %c0_1 = arith.constant 0 : index
    %c0_2 = arith.constant 0 : index
    %1 = vector.load %arg2[%c0_1, %c0_2] : memref<1x256xf32, #tpu.memory_space<vmem>>, vector<1x256xf32>
    %2 = vector.broadcast %1 : vector<1x256xf32> to vector<64x256xf32>
    %3 = arith.mulf %0, %2 : vector<64x256xf32>
    %c0_3 = arith.constant 0 : index
    %c0_4 = arith.constant 0 : index
    %4 = vector.load %arg3[%c0_3, %c0_4] : memref<1x256xf32, #tpu.memory_space<vmem>>, vector<1x256xf32>
    %5 = vector.broadcast %4 : vector<1x256xf32> to vector<64x256xf32>
    %6 = arith.addf %3, %5 : vector<64x256xf32>
    %cst = arith.constant 0.000000e+00 : f32
    %7 = vector.broadcast %cst : f32 to vector<64x256xf32>
    %8 = arith.maximumf %6, %7 : vector<64x256xf32>
    %9 = arith.truncf %8 : vector<64x256xf32> to vector<64x256xbf16>
    %c0_5 = arith.constant 0 : index
    %c0_6 = arith.constant 0 : index
    %10 = vector.load %arg4[%c0_5, %c0_6] : memref<64x256xbf16, #tpu.memory_space<vmem>>, vector<64x256xbf16>
    tpu.vector_store %arg4[%c0_5, %c0_6], %9 {strides = array<i32>} : memref<64x256xbf16, #tpu.memory_space<vmem>>, vector<64x256xbf16>,
    return
  }
  func.func @transform_0(%arg0: i32) -> (i32, i32) {
    %c0_i32 = arith.constant 0 : i32
    %c0_i32_0 = arith.constant 0 : i32
    return %arg0, %c0_i32 : i32, i32
  }
  func.func @transform_1(%arg0: i32) -> (i32, i32) {
    %c0_i32 = arith.constant 0 : i32
    %c0_i32_0 = arith.constant 0 : i32
    %c0_i32_1 = arith.constant 0 : i32
    return %c0_i32, %c0_i32_0 : i32, i32
  }
  func.func @transform_2(%arg0: i32) -> (i32, i32) {
    %c0_i32 = arith.constant 0 : i32
    %c0_i32_0 = arith.constant 0 : i32
    %c0_i32_1 = arith.constant 0 : i32
    return %c0_i32, %c0_i32_0 : i32, i32
  }
  func.func @transform_3(%arg0: i32) -> (i32, i32) {
    %c0_i32 = arith.constant 0 : i32
    %c0_i32_0 = arith.constant 0 : i32
    return %arg0, %c0_i32 : i32, i32
  }
}

module attributes {stable_mosaic.version = 11 : i64} {
  func.func @_conv_mm_kernel(%arg0: i32, %arg1: memref<512x32xbf16, #tpu.memory_space<vmem>>, %arg2: memref<32x12xbf16, #tpu.memory_space<vmem>>, %arg3: memref<512x12xf32, #tpu.memory_space<vmem>>) attributes {dimension_semantics = [#tpu.dimension_semantics<parallel>], iteration_bounds = array<i64: 5>, scalar_prefetch = 0 : i64, scratch_operands = 0 : i64, tpu.core_type = #tpu.core_type<tc>, window_params = [{transform_indices = @transform_0, window_bounds = array<i64: 512, 32>}, {pipeline_mode = #tpu.pipeline_mode<synchronous>, transform_indices = @transform_1, window_bounds = array<i64: 32, 12>}, {transform_indices = @transform_2, window_bounds = array<i64: 512, 12>}]} {
    %c0 = arith.constant 0 : index
    %c0_0 = arith.constant 0 : index
    %0 = vector.load %arg1[%c0, %c0_0] : memref<512x32xbf16, #tpu.memory_space<vmem>>, vector<512x32xbf16>
    %c0_1 = arith.constant 0 : index
    %c0_2 = arith.constant 0 : index
    %1 = vector.load %arg2[%c0_1, %c0_2] : memref<32x12xbf16, #tpu.memory_space<vmem>>, vector<32x12xbf16>
    %cst = arith.constant dense<0.000000e+00> : vector<512x12xf32>
    %2 = tpu.matmul %0, %1, %cst {dimension_numbers = #tpu.dot_dimension_numbers<[1], [0], [0], [1], [0, 0, 1, 1], [], []>} : vector<512x32xbf16>, vector<32x12xbf16>, vector<512x12xf32> -> vector<512x12xf32>
    %c0_3 = arith.constant 0 : index
    %c0_4 = arith.constant 0 : index
    %3 = vector.load %arg3[%c0_3, %c0_4] : memref<512x12xf32, #tpu.memory_space<vmem>>, vector<512x12xf32>
    tpu.vector_store %arg3[%c0_3, %c0_4], %2 {strides = array<i32>} : memref<512x12xf32, #tpu.memory_space<vmem>>, vector<512x12xf32>,
    return
  }
  func.func @transform_0(%arg0: i32) -> (i32, i32) {
    %c0_i32 = arith.constant 0 : i32
    %c0_i32_0 = arith.constant 0 : i32
    return %arg0, %c0_i32 : i32, i32
  }
  func.func @transform_1(%arg0: i32) -> (i32, i32) {
    %c0_i32 = arith.constant 0 : i32
    %c0_i32_0 = arith.constant 0 : i32
    %c0_i32_1 = arith.constant 0 : i32
    return %c0_i32, %c0_i32_0 : i32, i32
  }
  func.func @transform_2(%arg0: i32) -> (i32, i32) {
    %c0_i32 = arith.constant 0 : i32
    %c0_i32_0 = arith.constant 0 : i32
    return %arg0, %c0_i32 : i32, i32
  }
}

</mosaic_0001>

<llo_original>
// kernel: tile.28
$region0: #{tile.28}
  #allocation0 [shape = 's32[1]{0}', space=sflag, size = 0x4, scoped, tag = 'scoped memory for tile.28']
  %s0 = inlined_call_operand.vmem [shape: f32[16], index: 0, kind: input, shape index: {}]
  %s1 = inlined_call_operand.vmem [shape: f32[16,16], index: 1, kind: output, shape index: {}]
  // Predicated region
  $region2: #{tile.28} parent=0 // pred_check
    _
  $region3: #{tile.28} parent=0 // pred_check_branch
    %3 = sbr.rel (0) target = $region5
  $region4: #{tile.28} parent=0 // pred_region
    _
  $region5: #{tile.28} parent=0 // pred_fallthru
    _
  %v4 = vld [vmem:[%s0] ss:$0 sm:$0xff]
  %5 = vst [vmem:[%s1] sm:$0xff] %v4
  %s6 = scalar_lea.vmem %s1, 8
  %7 = vst [vmem:[%s6] sm:$0xff] %v4

// kernel: tile.29
$region0: #{tile.29}
  %s0 = inlined_call_operand.vmem [shape: f32[16,16], index: 0, kind: input, shape index: {}]
  %s1 = inlined_call_operand.vmem [shape: f32[1,256], index: 1, kind: output, shape index: {}]
  $region1: #{tile.29} parent=0
    #allocation0 [shape = 'u8[8192]{0}', space=vmem, size = 0x2000, scoped, tag = 'scoped mem for output reshape']
    %s2 = smov 3
    %v3 = vld [vmem:[%s0] ss:$8 sm:%s2]
    %vm4 = vcmask 130048
    %5 = vst.msk [vmem:[#allocation0] ss:$8 sm:$0x3] %vm4, %v3
    %s6 = scalar_lea.vmem %s0, 7
    %s7 = smov 3
    %v8 = vld [vmem:[%s6] ss:$8 sm:%s7]
    %9 = vrot.lane.b32.xlu0 %v8, 112
    %v10 = vpop.permute.xlu0 %9
    %vm11 = vcmask 1048448
    %12 = vst.msk [vmem:[#allocation0] ss:$8 sm:$0x3] %vm11, %v10
    %s13 = scalar_lea.vmem %s0, 6
    %s14 = smov 3
    %v15 = vld [vmem:[%s13] ss:$8 sm:%s14]
    %16 = vrot.lane.b32.xlu0 %v15, 96
    %v17 = vpop.permute.xlu0 %16
    %vm18 = vcmask 917248
    %19 = vst.msk [vmem:[#allocation0] ss:$8 sm:$0x3] %vm18, %v17
    %s20 = scalar_lea.vmem %s0, 5
    %s21 = smov 3
    %v22 = vld [vmem:[%s20] ss:$8 sm:%s21]
    %23 = vrot.lane.b32.xlu0 %v22, 80
    %v24 = vpop.permute.xlu0 %23
    %vm25 = vcmask 786048
    %26 = vst.msk [vmem:[#allocation0] ss:$8 sm:$0x3] %vm25, %v24
    %s27 = scalar_lea.vmem %s0, 4
    %s28 = smov 3
    %v29 = vld [vmem:[%s27] ss:$8 sm:%s28]
    %30 = vrot.lane.b32.xlu0 %v29, 64
    %v31 = vpop.permute.xlu0 %30
    %vm32 = vcmask 654848
    %33 = vst.msk [vmem:[#allocation0] ss:$8 sm:$0x3] %vm32, %v31
    %s34 = scalar_lea.vmem %s0, 3
    %s35 = smov 3
    %v36 = vld [vmem:[%s34] ss:$8 sm:%s35]
    %37 = vrot.lane.b32.xlu0 %v36, 48
    %v38 = vpop.permute.xlu0 %37
    %vm39 = vcmask 523648
    %40 = vst.msk [vmem:[#allocation0] ss:$8 sm:$0x3] %vm39, %v38
    %s41 = scalar_lea.vmem %s0, 2
    %s42 = smov 3
    %v43 = vld [vmem:[%s41] ss:$8 sm:%s42]
    %44 = vrot.lane.b32.xlu0 %v43, 32
    %v45 = vpop.permute.xlu0 %44
    %vm46 = vcmask 392448
    %47 = vst.msk [vmem:[#allocation0] ss:$8 sm:$0x3] %vm46, %v45
    %s48 = scalar_lea.vmem %s0, 1
    %s49 = smov 3
    %v50 = vld [vmem:[%s48] ss:$8 sm:%s49]
    %51 = vrot.lane.b32.xlu0 %v50, 16
    %v52 = vpop.permute.xlu0 %51
    %vm53 = vcmask 261248
    %54 = vst.msk [vmem:[#allocation0] ss:$8 sm:$0x3] %vm53, %v52
    %s56 = sshllo.u32 0, 1
    %v58 = vld [vmem:[#allocation0] sm:%s56]
    %s59 = sshllo.u32 0, 1
    %60 = vst [vmem:[%s1] sm:%s59] %v58
    %s61 = scalar_lea.vmem [#allocation0], 8
    %v62 = vld [vmem:[%s61] sm:%s56]
    %s63 = sshllo.u32 0, 1
    %s64 = scalar_lea.vmem %s1, 1
    %65 = vst [vmem:[%s64] sm:%s63] %v62

// kernel: dec_forward.5
$region0: #{dec_forward.5}
  #allocation0 [shape = 'u32[]', space=smem, size = 0x4, offset = 0x4, fixed_abs, tag = 'smem constant byte address 0x4 - core index']
  #allocation1 [shape = 'u32[144,128]{1,0:T(1,128)}', space=vmem, size = 0x12000, scoped, tag = 'internal scratch']
  %s0 = inlined_call_operand.vmem [shape: bf16[168,128], index: 0, kind: input, shape index: {}]
  %s1 = inlined_call_operand.vmem [shape: bf16[128,64], index: 1, kind: input, shape index: {}]
  %s2 = inlined_call_operand.vmem [shape: f32[168,64], index: 2, kind: output, shape index: {}]
  %s3 = sld [smem:[#allocation0]]
  $region18: #{dec_forward.5} parent=0
    _
  %s5 = ssub.s32 1, %s3
  %s6 = scalar_select 0, %s5, %s3
  // Predicated region
  $region2: #{dec_forward.5} parent=0 // pred_check
    _
  $region3: #{dec_forward.5} parent=0 // pred_check_branch
    %8 = sbr.rel (0) target = $region5
  $region4: #{dec_forward.5} parent=0 // pred_region
    _
  $region5: #{dec_forward.5} parent=0 // pred_fallthru
    _
  // Predicated region
  $region6: #{dec_forward.5} parent=0 // pred_check
    _
  $region7: #{dec_forward.5} parent=0 // pred_check_branch
    %10 = sbr.rel (0) target = $region9
  $region8: #{dec_forward.5} parent=0 // pred_region
    _
  $region9: #{dec_forward.5} parent=0 // pred_fallthru
    _
  %v12 = vld [vmem:[%s0] sm:$0xf]
  %v13 = vld [vmem:[%s0 + $0x4] sm:$0xf]
  %v14 = vld [vmem:[%s0 + $0x8] sm:$0xf]
  %v15 = vld [vmem:[%s0 + $0xc] sm:$0xf]
  %v16 = vld [vmem:[%s0 + $0x10] sm:$0xf]
  %v17 = vld [vmem:[%s0 + $0x14] sm:$0xf]
  %v18 = vld [vmem:[%s0 + $0x18] sm:$0xf]
  %v19 = vld [vmem:[%s0 + $0x1c] sm:$0xf]
  %v20 = vld [vmem:[%s0 + $0x20] sm:$0xf]
  %v21 = vld [vmem:[%s0 + $0x24] sm:$0xf]
  %v22 = vld [vmem:[%s0 + $0x28] sm:$0xf]
  %v23 = vld [vmem:[%s0 + $0x2c] sm:$0xf]
  %v24 = vld [vmem:[%s0 + $0x30] sm:$0xf]
  %v25 = vld [vmem:[%s0 + $0x34] sm:$0xf]
  %v26 = vld [vmem:[%s0 + $0x38] sm:$0xf]
  %v27 = vld [vmem:[%s0 + $0x3c] sm:$0xf]
  %v28 = vld [vmem:[%s0 + $0x40] sm:$0xf]
  %v29 = vld [vmem:[%s0 + $0x44] sm:$0xf]
  %v30 = vld [vmem:[%s0 + $0x48] sm:$0xf]
  %v31 = vld [vmem:[%s0 + $0x4c] sm:$0xf]
  %v32 = vld [vmem:[%s0 + $0x50] sm:$0xf]
  %v33 = vld [vmem:[%s1] sm:$0xf]
  %v34 = vld [vmem:[%s1 + $0x4] sm:$0xf]
  %v35 = vld [vmem:[%s1 + $0x8] sm:$0xf]
  %v36 = vld [vmem:[%s1 + $0xc] sm:$0xf]
  %v37 = vld [vmem:[%s1 + $0x10] sm:$0xf]
  %v38 = vld [vmem:[%s1 + $0x14] sm:$0xf]
  %v39 = vld [vmem:[%s1 + $0x18] sm:$0xf]
  %v40 = vld [vmem:[%s1 + $0x1c] sm:$0xf]
  %v41 = vld [vmem:[%s1 + $0x20] sm:$0xf]
  %v42 = vld [vmem:[%s1 + $0x24] sm:$0xf]
  %v43 = vld [vmem:[%s1 + $0x28] sm:$0xf]
  %v44 = vld [vmem:[%s1 + $0x2c] sm:$0xf]
  %v45 = vld [vmem:[%s1 + $0x30] sm:$0xf]
  %v46 = vld [vmem:[%s1 + $0x34] sm:$0xf]
  %v47 = vld [vmem:[%s1 + $0x38] sm:$0xf]
  %v48 = vld [vmem:[%s1 + $0x3c] sm:$0xf]
  %v70 = vunpack.c.l.b16 %v12
  %v71 = vunpack.c.l.b16 %v13
  %v72 = vunpack.c.l.b16 %v14
  %v73 = vunpack.c.l.b16 %v15
  %v74 = vunpack.c.l.b16 %v16
  %v75 = vunpack.c.l.b16 %v17
  %v76 = vunpack.c.l.b16 %v18
  %v77 = vunpack.c.l.b16 %v19
  %v78 = vunpack.c.l.b16 %v20
  %v79 = vunpack.c.l.b16 %v21
  %v80 = vunpack.c.l.b16 %v22
  %v81 = vunpack.c.l.b16 %v23
  %v82 = vunpack.c.l.b16 %v24
  %v83 = vunpack.c.l.b16 %v25
  %v84 = vunpack.c.l.b16 %v26
  %v85 = vunpack.c.l.b16 %v27
  %v86 = vunpack.c.l.b16 %v28
  %v87 = vunpack.c.l.b16 %v29
  %v88 = vunpack.c.l.b16 %v30
  %v89 = vunpack.c.l.b16 %v31
  %v90 = vunpack.c.l.b16 %v32
  %v91 = vpack.c.b16 %v71, %v70
  %v92 = vpack.c.b16 %v73, %v72
  %v93 = vpack.c.b16 %v75, %v74
  %v94 = vpack.c.b16 %v77, %v76
  %v95 = vpack.c.b16 %v79, %v78
  %v96 = vpack.c.b16 %v81, %v80
  %v97 = vpack.c.b16 %v83, %v82
  %v98 = vpack.c.b16 %v85, %v84
  %v99 = vpack.c.b16 %v87, %v86
  %v100 = vpack.c.b16 %v89, %v88
  %v101 = vpack.c.b16 %v90, %v90
  %v129 = vunpack.c.l.b16 %v33
  %v130 = vunpack.c.l.b16 %v34
  %v131 = vunpack.c.l.b16 %v35
  %v132 = vunpack.c.l.b16 %v36
  %v133 = vunpack.c.l.b16 %v37
  %v134 = vunpack.c.l.b16 %v38
  %v135 = vunpack.c.l.b16 %v39
  %v136 = vunpack.c.l.b16 %v40
  %v137 = vunpack.c.l.b16 %v41
  %v138 = vunpack.c.l.b16 %v42
  %v139 = vunpack.c.l.b16 %v43
  %v140 = vunpack.c.l.b16 %v44
  %v141 = vunpack.c.l.b16 %v45
  %v142 = vunpack.c.l.b16 %v46
  %v143 = vunpack.c.l.b16 %v47
  %v144 = vunpack.c.l.b16 %v48
  %v145 = vpack.c.b16 %v130, %v129
  %v146 = vpack.c.b16 %v132, %v131
  %v147 = vpack.c.b16 %v134, %v133
  %v148 = vpack.c.b16 %v136, %v135
  %v149 = vpack.c.b16 %v138, %v137
  %v150 = vpack.c.b16 %v140, %v139
  %v151 = vpack.c.b16 %v142, %v141
  %v152 = vpack.c.b16 %v144, %v143
  %161 = vmatprep.subr.bf16.mxu0 0
  %162 = vmatpush1.bf16.msra.mxu0 %v145
  %163 = vmatprep.subr.bf16.mxu0 0
  %164 = vmatpush1.bf16.msra.mxu0 %v146
  %165 = vmatprep.subr.bf16.mxu0 0
  %166 = vmatpush1.bf16.msra.mxu0 %v147
  %167 = vmatprep.subr.bf16.mxu0 0
  %168 = vmatpush1.bf16.msra.mxu0 %v148
  %169 = vmatprep.subr.bf16.mxu0 0
  %170 = vmatpush1.bf16.msra.mxu0 %v149
  %171 = vmatprep.subr.bf16.mxu0 0
  %172 = vmatpush1.bf16.msra.mxu0 %v150
  %173 = vmatprep.subr.bf16.mxu0 0
  %174 = vmatpush1.bf16.msra.mxu0 %v151
  %175 = vmatprep.subr.bf16.mxu0 0
  %176 = vmatpush1.bf16.msra.mxu0 %v152
  %177 = vmatprep.subr.bf16.mxu0 0
  %178 = vmatpush1.bf16.msra.mxu0 0
  %179 = vmatprep.subr.bf16.mxu0 0
  %180 = vmatpush1.bf16.msra.mxu0 0
  %181 = vmatprep.subr.bf16.mxu0 0
  %182 = vmatpush1.bf16.msra.mxu0 0
  %183 = vmatprep.subr.bf16.mxu0 0
  %184 = vmatpush1.bf16.msra.mxu0 0
  %185 = vmatprep.subr.bf16.mxu0 0
  %186 = vmatpush1.bf16.msra.mxu0 0
  %187 = vmatprep.subr.bf16.mxu0 0
  %188 = vmatpush1.bf16.msra.mxu0 0
  %189 = vmatprep.subr.bf16.mxu0 0
  %190 = vmatpush1.bf16.msra.mxu0 0
  %191 = vmatprep.subr.bf16.mxu0 0
  %192 = vmatpush1.bf16.msra.mxu0 0
  %193 = vmatprep.mubr.bf16.mxu0 0
  %194 = vmatmul.mubr.bf16.gmra.mrb[0].mxu0 %v91
  %v195 = vpop.f32.mrb[0].mxu0
  %v196 = vadd.f32 0.0, %v195
  %v197 = vpop.f32.mrb[0].mxu0
  %v198 = vpop.f32.mrb[0].mxu0
  %v199 = vadd.f32 0.0, %v198
  %v200 = vpop.f32.mrb[0].mxu0
  %201 = vmatprep.mubr.bf16.mxu0 0
  %202 = vmatmul.mubr.bf16.gmra.mrb[0].mxu0 %v92
  %v203 = vpop.f32.mrb[0].mxu0
  %v204 = vadd.f32 0.0, %v203
  %v205 = vpop.f32.mrb[0].mxu0
  %v206 = vpop.f32.mrb[0].mxu0
  %v207 = vadd.f32 0.0, %v206
  %v208 = vpop.f32.mrb[0].mxu0
  %209 = vmatprep.mubr.bf16.mxu0 0
  %210 = vmatmul.mubr.bf16.gmra.mrb[0].mxu0 %v93
  %v211 = vpop.f32.mrb[0].mxu0
  %v212 = vadd.f32 0.0, %v211
  %v213 = vpop.f32.mrb[0].mxu0
  %v214 = vpop.f32.mrb[0].mxu0
  %v215 = vadd.f32 0.0, %v214
  %v216 = vpop.f32.mrb[0].mxu0
  %217 = vmatprep.mubr.bf16.mxu0 0
  %218 = vmatmul.mubr.bf16.gmra.mrb[0].mxu0 %v94
  %v219 = vpop.f32.mrb[0].mxu0
  %v220 = vadd.f32 0.0, %v219
  %v221 = vpop.f32.mrb[0].mxu0
  %v222 = vpop.f32.mrb[0].mxu0
  %v223 = vadd.f32 0.0, %v222
  %v224 = vpop.f32.mrb[0].mxu0
  %225 = vmatprep.mubr.bf16.mxu0 0
  %226 = vmatmul.mubr.bf16.gmra.mrb[0].mxu0 %v95
  %v227 = vpop.f32.mrb[0].mxu0
  %v228 = vadd.f32 0.0, %v227
  %v229 = vpop.f32.mrb[0].mxu0
  %v230 = vpop.f32.mrb[0].mxu0
  %v231 = vadd.f32 0.0, %v230
  %v232 = vpop.f32.mrb[0].mxu0
  %233 = vmatprep.mubr.bf16.mxu0 0
  %234 = vmatmul.mubr.bf16.gmra.mrb[0].mxu0 %v96
  %v235 = vpop.f32.mrb[0].mxu0
  %v236 = vadd.f32 0.0, %v235
  %v237 = vpop.f32.mrb[0].mxu0
  %v238 = vpop.f32.mrb[0].mxu0
  %v239 = vadd.f32 0.0, %v238
  %v240 = vpop.f32.mrb[0].mxu0
  %241 = vmatprep.mubr.bf16.mxu0 0
  %242 = vmatmul.mubr.bf16.gmra.mrb[0].mxu0 %v97
  %v243 = vpop.f32.mrb[0].mxu0
  %v244 = vadd.f32 0.0, %v243
  %v245 = vpop.f32.mrb[0].mxu0
  %v246 = vpop.f32.mrb[0].mxu0
  %v247 = vadd.f32 0.0, %v246
  %v248 = vpop.f32.mrb[0].mxu0
  %249 = vmatprep.mubr.bf16.mxu0 0
  %250 = vmatmul.mubr.bf16.gmra.mrb[0].mxu0 %v98
  %v251 = vpop.f32.mrb[0].mxu0
  %v252 = vadd.f32 0.0, %v251
  %v253 = vpop.f32.mrb[0].mxu0
  %v254 = vpop.f32.mrb[0].mxu0
  %v255 = vadd.f32 0.0, %v254
  %v256 = vpop.f32.mrb[0].mxu0
  %257 = vmatprep.mubr.bf16.mxu0 0
  %258 = vmatmul.mubr.bf16.gmra.mrb[0].mxu0 %v99
  %v259 = vpop.f32.mrb[0].mxu0
  %v260 = vadd.f32 0.0, %v259
  %v261 = vpop.f32.mrb[0].mxu0
  %v262 = vpop.f32.mrb[0].mxu0
  %v263 = vadd.f32 0.0, %v262
  %v264 = vpop.f32.mrb[0].mxu0
  %265 = vmatprep.mubr.bf16.mxu0 0
  %266 = vmatmul.mubr.bf16.gmra.mrb[0].mxu0 %v100
  %v267 = vpop.f32.mrb[0].mxu0
  %v268 = vadd.f32 0.0, %v267
  %v269 = vpop.f32.mrb[0].mxu0
  %v270 = vpop.f32.mrb[0].mxu0
  %v271 = vadd.f32 0.0, %v270
  %v272 = vpop.f32.mrb[0].mxu0
  %273 = vmatprep.mubr.bf16.mxu0 0
  %274 = vmatmul.mubr.bf16.gmra.mrb[0].mxu0 %v101
  %v275 = vpop.f32.mrb[0].mxu0
  %v276 = vadd.f32 0.0, %v275
  %v277 = vpop.f32.mrb[0].mxu0
  %v278 = vpop.f32.mrb[0].mxu0
  %v279 = vpop.f32.mrb[0].mxu0
  %280 = vdwg.mxu0
  %vm281 = vcmask 523264
  %282 = vst.msk [vmem:[%s2] sm:$0xff] %vm281, %v196
  %283 = vst.msk [vmem:[%s2 + $0x8] sm:$0xff] %vm281, %v199
  %284 = vst.msk [vmem:[%s2 + $0x10] sm:$0xff] %vm281, %v204
  %285 = vst.msk [vmem:[%s2 + $0x18] sm:$0xff] %vm281, %v207
  %286 = vst.msk [vmem:[%s2 + $0x20] sm:$0xff] %vm281, %v212
  %287 = vst.msk [vmem:[%s2 + $0x28] sm:$0xff] %vm281, %v215
  %288 = vst.msk [vmem:[%s2 + $0x30] sm:$0xff] %vm281, %v220
  %289 = vst.msk [vmem:[%s2 + $0x38] sm:$0xff] %vm281, %v223
  %290 = vst.msk [vmem:[%s2 + $0x40] sm:$0xff] %vm281, %v228
  %291 = vst.msk [vmem:[%s2 + $0x48] sm:$0xff] %vm281, %v231
  %292 = vst.msk [vmem:[%s2 + $0x50] sm:$0xff] %vm281, %v236
  %293 = vst.msk [vmem:[%s2 + $0x58] sm:$0xff] %vm281, %v239
  %294 = vst.msk [vmem:[%s2 + $0x60] sm:$0xff] %vm281, %v244
  %295 = vst.msk [vmem:[%s2 + $0x68] sm:$0xff] %vm281, %v247
  %296 = vst.msk [vmem:[%s2 + $0x70] sm:$0xff] %vm281, %v252
  %297 = vst.msk [vmem:[%s2 + $0x78] sm:$0xff] %vm281, %v255
  %298 = vst.msk [vmem:[%s2 + $0x80] sm:$0xff] %vm281, %v260
  %299 = vst.msk [vmem:[%s2 + $0x88] sm:$0xff] %vm281, %v263
  %300 = vst.msk [vmem:[%s2 + $0x90] sm:$0xff] %vm281, %v268
  %301 = vst.msk [vmem:[%s2 + $0x98] sm:$0xff] %vm281, %v271
  %302 = vst.msk [vmem:[%s2 + $0xa0] sm:$0xff] %vm281, %v276
  // Predicated region
  $region10: #{dec_forward.5} parent=0 // pred_check
    _
  $region11: #{dec_forward.5} parent=0 // pred_check_branch
    %304 = sbr.rel (0) target = $region13
  $region12: #{dec_forward.5} parent=0 // pred_region
    _
  $region13: #{dec_forward.5} parent=0 // pred_fallthru
    _
  // Predicated region
  $region14: #{dec_forward.5} parent=0 // pred_check
    _
  $region15: #{dec_forward.5} parent=0 // pred_check_branch
    %306 = sbr.rel (0) target = $region17
  $region16: #{dec_forward.5} parent=0 // pred_region
    _
  $region17: #{dec_forward.5} parent=0 // pred_fallthru
    _

// kernel: dec_forward.6
$region0: #{dec_forward.6}
  #allocation0 [shape = 'u32[]', space=smem, size = 0x4, offset = 0x4, fixed_abs, tag = 'smem constant byte address 0x4 - core index']
  #allocation1 [shape = 'u32[144,128]{1,0:T(1,128)}', space=vmem, size = 0x12000, scoped, tag = 'internal scratch']
  %s0 = inlined_call_operand.vmem [shape: f32[32,256], index: 0, kind: input, shape index: {}]
  %s1 = inlined_call_operand.vmem [shape: f32[1,256], index: 1, kind: input, shape index: {}]
  %s2 = inlined_call_operand.vmem [shape: f32[1,256], index: 2, kind: input, shape index: {}]
  %s3 = inlined_call_operand.vmem [shape: bf16[32,256], index: 3, kind: output, shape index: {}]
  %s4 = sld [smem:[#allocation0]]
  $region22: #{dec_forward.6} parent=0
    _
  %s6 = ssub.s32 1, %s4
  %s7 = scalar_select 0, %s6, %s4
  // Predicated region
  $region2: #{dec_forward.6} parent=0 // pred_check
    _
  $region3: #{dec_forward.6} parent=0 // pred_check_branch
    %9 = sbr.rel (0) target = $region5
  $region4: #{dec_forward.6} parent=0 // pred_region
    _
  $region5: #{dec_forward.6} parent=0 // pred_fallthru
    _
  // Predicated region
  $region6: #{dec_forward.6} parent=0 // pred_check
    _
  $region7: #{dec_forward.6} parent=0 // pred_check_branch
    %11 = sbr.rel (0) target = $region9
  $region8: #{dec_forward.6} parent=0 // pred_region
    _
  $region9: #{dec_forward.6} parent=0 // pred_fallthru
    _
  // Predicated region
  $region10: #{dec_forward.6} parent=0 // pred_check
    _
  $region11: #{dec_forward.6} parent=0 // pred_check_branch
    %13 = sbr.rel (0) target = $region13
  $region12: #{dec_forward.6} parent=0 // pred_region
    _
  $region13: #{dec_forward.6} parent=0 // pred_fallthru
    _
  %v14 = vld [vmem:[%s0] sm:$0xff]
  %v15 = vld [vmem:[%s0 + $0x8] sm:$0xff]
  %v16 = vld [vmem:[%s0 + $0x10] sm:$0xff]
  %v17 = vld [vmem:[%s0 + $0x18] sm:$0xff]
  %v18 = vld [vmem:[%s0 + $0x20] sm:$0xff]
  %v19 = vld [vmem:[%s0 + $0x28] sm:$0xff]
  %v20 = vld [vmem:[%s0 + $0x30] sm:$0xff]
  %v21 = vld [vmem:[%s0 + $0x38] sm:$0xff]
  %v22 = vld [vmem:[%s1] sm:$0x3]
  %v24 = vlaneseq
  %v25 = vshrl.u32 %v24, 7
  %v26 = vsub.s32 0, %v25
  %v27 = vrot.slane %v22, %v26
  %v28 = vlaneseq
  %v29 = vshrl.u32 %v28, 7
  %v30 = vsub.s32 1, %v29
  %v31 = vrot.slane %v22, %v30
  %v34 = vmul.f32 %v14, %v27
  %v35 = vmul.f32 %v15, %v31
  %v36 = vmul.f32 %v16, %v27
  %v37 = vmul.f32 %v17, %v31
  %v38 = vmul.f32 %v18, %v27
  %v39 = vmul.f32 %v19, %v31
  %v40 = vmul.f32 %v20, %v27
  %v41 = vmul.f32 %v21, %v31
  %v42 = vld [vmem:[%s2] sm:$0x3]
  %v44 = vlaneseq
  %v45 = vshrl.u32 %v44, 7
  %v46 = vsub.s32 0, %v45
  %v47 = vrot.slane %v42, %v46
  %v48 = vlaneseq
  %v49 = vshrl.u32 %v48, 7
  %v50 = vsub.s32 1, %v49
  %v51 = vrot.slane %v42, %v50
  %v54 = vadd.f32 %v34, %v47
  %v55 = vadd.f32 %v35, %v51
  %v56 = vadd.f32 %v36, %v47
  %v57 = vadd.f32 %v37, %v51
  %v58 = vadd.f32 %v38, %v47
  %v59 = vadd.f32 %v39, %v51
  %v60 = vadd.f32 %v40, %v47
  %v61 = vadd.f32 %v41, %v51
  %v62 = vmax.f32 %v54, 0.0
  %v63 = vmax.f32 %v55, 0.0
  %v64 = vmax.f32 %v56, 0.0
  %v65 = vmax.f32 %v57, 0.0
  %v66 = vmax.f32 %v58, 0.0
  %v67 = vmax.f32 %v59, 0.0
  %v68 = vmax.f32 %v60, 0.0
  %v69 = vmax.f32 %v61, 0.0
  %v70 = vpack.c.bf16 %v64, %v62
  %v71 = vpack.c.bf16 %v65, %v63
  %v72 = vpack.c.bf16 %v68, %v66
  %v73 = vpack.c.bf16 %v69, %v67
  %v78 = vunpack.c.l.b16 %v70
  %v79 = vunpack.c.l.b16 %v71
  %v80 = vunpack.c.h.b16 %v70
  %v81 = vunpack.c.h.b16 %v71
  %v82 = vunpack.c.l.b16 %v72
  %v83 = vunpack.c.l.b16 %v73
  %v84 = vunpack.c.h.b16 %v72
  %v85 = vunpack.c.h.b16 %v73
  %v86 = vpack.c.b16 %v79, %v78
  %v87 = vpack.c.b16 %v81, %v80
  %v88 = vpack.c.b16 %v83, %v82
  %v89 = vpack.c.b16 %v85, %v84
  %94 = vst [vmem:[%s3] sm:$0xff] %v86
  %95 = vst [vmem:[%s3 + $0x8] sm:$0xff] %v87
  %96 = vst [vmem:[%s3 + $0x10] sm:$0xff] %v88
  %97 = vst [vmem:[%s3 + $0x18] sm:$0xff] %v89
  // Predicated region
  $region14: #{dec_forward.6} parent=0 // pred_check
    _
  $region15: #{dec_forward.6} parent=0 // pred_check_branch
    %99 = sbr.rel (0) target = $region17
  $region16: #{dec_forward.6} parent=0 // pred_region
    _
  $region17: #{dec_forward.6} parent=0 // pred_fallthru
    _
  // Predicated region
  $region18: #{dec_forward.6} parent=0 // pred_check
    _
  $region19: #{dec_forward.6} parent=0 // pred_check_branch
    %101 = sbr.rel (0) target = $region21
  $region20: #{dec_forward.6} parent=0 // pred_region
    _
  $region21: #{dec_forward.6} parent=0 // pred_fallthru
    _

// kernel: dec_forward.7
$region0: #{dec_forward.7}
  #allocation0 [shape = 'u32[]', space=smem, size = 0x4, offset = 0x4, fixed_abs, tag = 'smem constant byte address 0x4 - core index']
  #allocation1 [shape = 'u32[144,128]{1,0:T(1,128)}', space=vmem, size = 0x12000, scoped, tag = 'internal scratch']
  %s0 = inlined_call_operand.vmem [shape: bf16[584,64], index: 0, kind: input, shape index: {}]
  %s1 = inlined_call_operand.vmem [shape: bf16[64,32], index: 1, kind: input, shape index: {}]
  %s2 = inlined_call_operand.vmem [shape: f32[584,32], index: 2, kind: output, shape index: {}]
  %s3 = sld [smem:[#allocation0]]
  $region18: #{dec_forward.7} parent=0
    _
  %s5 = ssub.s32 1, %s3
  %s6 = scalar_select 0, %s5, %s3
  // Predicated region
  $region2: #{dec_forward.7} parent=0 // pred_check
    _
  $region3: #{dec_forward.7} parent=0 // pred_check_branch
    %8 = sbr.rel (0) target = $region5
  $region4: #{dec_forward.7} parent=0 // pred_region
    _
  $region5: #{dec_forward.7} parent=0 // pred_fallthru
    _
  // Predicated region
  $region6: #{dec_forward.7} parent=0 // pred_check
    _
  $region7: #{dec_forward.7} parent=0 // pred_check_branch
    %10 = sbr.rel (0) target = $region9
  $region8: #{dec_forward.7} parent=0 // pred_region
    _
  $region9: #{dec_forward.7} parent=0 // pred_fallthru
    _
  %v12 = vld [vmem:[%s0] sm:$0xf]
  %v13 = vld [vmem:[%s0 + $0x4] sm:$0xf]
  %v14 = vld [vmem:[%s0 + $0x8] sm:$0xf]
  %v15 = vld [vmem:[%s0 + $0xc] sm:$0xf]
  %v16 = vld [vmem:[%s0 + $0x10] sm:$0xf]
  %v17 = vld [vmem:[%s0 + $0x14] sm:$0xf]
  %v18 = vld [vmem:[%s0 + $0x18] sm:$0xf]
  %v19 = vld [vmem:[%s0 + $0x1c] sm:$0xf]
  %v20 = vld [vmem:[%s0 + $0x20] sm:$0xf]
  %v21 = vld [vmem:[%s0 + $0x24] sm:$0xf]
  %v22 = vld [vmem:[%s0 + $0x28] sm:$0xf]
  %v23 = vld [vmem:[%s0 + $0x2c] sm:$0xf]
  %v24 = vld [vmem:[%s0 + $0x30] sm:$0xf]
  %v25 = vld [vmem:[%s0 + $0x34] sm:$0xf]
  %v26 = vld [vmem:[%s0 + $0x38] sm:$0xf]
  %v27 = vld [vmem:[%s0 + $0x3c] sm:$0xf]
  %v28 = vld [vmem:[%s0 + $0x40] sm:$0xf]
  %v29 = vld [vmem:[%s0 + $0x44] sm:$0xf]
  %v30 = vld [vmem:[%s0 + $0x48] sm:$0xf]
  %v31 = vld [vmem:[%s0 + $0x4c] sm:$0xf]
  %v32 = vld [vmem:[%s0 + $0x50] sm:$0xf]
  %v33 = vld [vmem:[%s0 + $0x54] sm:$0xf]
  %v34 = vld [vmem:[%s0 + $0x58] sm:$0xf]
  %v35 = vld [vmem:[%s0 + $0x5c] sm:$0xf]
  %v36 = vld [vmem:[%s0 + $0x60] sm:$0xf]
  %v37 = vld [vmem:[%s0 + $0x64] sm:$0xf]
  %v38 = vld [vmem:[%s0 + $0x68] sm:$0xf]
  %v39 = vld [vmem:[%s0 + $0x6c] sm:$0xf]
  %v40 = vld [vmem:[%s0 + $0x70] sm:$0xf]
  %v41 = vld [vmem:[%s0 + $0x74] sm:$0xf]
  %v42 = vld [vmem:[%s0 + $0x78] sm:$0xf]
  %v43 = vld [vmem:[%s0 + $0x7c] sm:$0xf]
  %v44 = vld [vmem:[%s0 + $0x80] sm:$0xf]
  %v45 = vld [vmem:[%s0 + $0x84] sm:$0xf]
  %v46 = vld [vmem:[%s0 + $0x88] sm:$0xf]
  %v47 = vld [vmem:[%s0 + $0x8c] sm:$0xf]
  %v48 = vld [vmem:[%s0 + $0x90] sm:$0xf]
  %v49 = vld [vmem:[%s0 + $0x94] sm:$0xf]
  %v50 = vld [vmem:[%s0 + $0x98] sm:$0xf]
  %v51 = vld [vmem:[%s0 + $0x9c] sm:$0xf]
  %v52 = vld [vmem:[%s0 + $0xa0] sm:$0xf]
  %v53 = vld [vmem:[%s0 + $0xa4] sm:$0xf]
  %v54 = vld [vmem:[%s0 + $0xa8] sm:$0xf]
  %v55 = vld [vmem:[%s0 + $0xac] sm:$0xf]
  %v56 = vld [vmem:[%s0 + $0xb0] sm:$0xf]
  %v57 = vld [vmem:[%s0 + $0xb4] sm:$0xf]
  %v58 = vld [vmem:[%s0 + $0xb8] sm:$0xf]
  %v59 = vld [vmem:[%s0 + $0xbc] sm:$0xf]
  %v60 = vld [vmem:[%s0 + $0xc0] sm:$0xf]
  %v61 = vld [vmem:[%s0 + $0xc4] sm:$0xf]
  %v62 = vld [vmem:[%s0 + $0xc8] sm:$0xf]
  %v63 = vld [vmem:[%s0 + $0xcc] sm:$0xf]
  %v64 = vld [vmem:[%s0 + $0xd0] sm:$0xf]
  %v65 = vld [vmem:[%s0 + $0xd4] sm:$0xf]
  %v66 = vld [vmem:[%s0 + $0xd8] sm:$0xf]
  %v67 = vld [vmem:[%s0 + $0xdc] sm:$0xf]
  %v68 = vld [vmem:[%s0 + $0xe0] sm:$0xf]
  %v69 = vld [vmem:[%s0 + $0xe4] sm:$0xf]
  %v70 = vld [vmem:[%s0 + $0xe8] sm:$0xf]
  %v71 = vld [vmem:[%s0 + $0xec] sm:$0xf]
  %v72 = vld [vmem:[%s0 + $0xf0] sm:$0xf]
  %v73 = vld [vmem:[%s0 + $0xf4] sm:$0xf]
  %v74 = vld [vmem:[%s0 + $0xf8] sm:$0xf]
  %v75 = vld [vmem:[%s0 + $0xfc] sm:$0xf]
  %v76 = vld [vmem:[%s0 + $0x100] sm:$0xf]
  %v77 = vld [vmem:[%s0 + $0x104] sm:$0xf]
  %v78 = vld [vmem:[%s0 + $0x108] sm:$0xf]
  %v79 = vld [vmem:[%s0 + $0x10c] sm:$0xf]
  %v80 = vld [vmem:[%s0 + $0x110] sm:$0xf]
  %v81 = vld [vmem:[%s0 + $0x114] sm:$0xf]
  %v82 = vld [vmem:[%s0 + $0x118] sm:$0xf]
  %v83 = vld [vmem:[%s0 + $0x11c] sm:$0xf]
  %v84 = vld [vmem:[%s0 + $0x120] sm:$0xf]
  %v85 = vld [vmem:[%s1] sm:$0xf]
  %v86 = vld [vmem:[%s1 + $0x4] sm:$0xf]
  %v87 = vld [vmem:[%s1 + $0x8] sm:$0xf]
  %v88 = vld [vmem:[%s1 + $0xc] sm:$0xf]
  %v89 = vld [vmem:[%s1 + $0x10] sm:$0xf]
  %v90 = vld [vmem:[%s1 + $0x14] sm:$0xf]
  %v91 = vld [vmem:[%s1 + $0x18] sm:$0xf]
  %v92 = vld [vmem:[%s1 + $0x1c] sm:$0xf]
  %v166 = vunpack.c.l.b16 %v12
  %v167 = vunpack.c.l.b16 %v13
  %v168 = vunpack.c.l.b16 %v14
  %v169 = vunpack.c.l.b16 %v15
  %v170 = vunpack.c.l.b16 %v16
  %v171 = vunpack.c.l.b16 %v17
  %v172 = vunpack.c.l.b16 %v18
  %v173 = vunpack.c.l.b16 %v19
  %v174 = vunpack.c.l.b16 %v20
  %v175 = vunpack.c.l.b16 %v21
  %v176 = vunpack.c.l.b16 %v22
  %v177 = vunpack.c.l.b16 %v23
  %v178 = vunpack.c.l.b16 %v24
  %v179 = vunpack.c.l.b16 %v25
  %v180 = vunpack.c.l.b16 %v26
  %v181 = vunpack.c.l.b16 %v27
  %v182 = vunpack.c.l.b16 %v28
  %v183 = vunpack.c.l.b16 %v29
  %v184 = vunpack.c.l.b16 %v30
  %v185 = vunpack.c.l.b16 %v31
  %v186 = vunpack.c.l.b16 %v32
  %v187 = vunpack.c.l.b16 %v33
  %v188 = vunpack.c.l.b16 %v34
  %v189 = vunpack.c.l.b16 %v35
  %v190 = vunpack.c.l.b16 %v36
  %v191 = vunpack.c.l.b16 %v37
  %v192 = vunpack.c.l.b16 %v38
  %v193 = vunpack.c.l.b16 %v39
  %v194 = vunpack.c.l.b16 %v40
  %v195 = vunpack.c.l.b16 %v41
  %v196 = vunpack.c.l.b16 %v42
  %v197 = vunpack.c.l.b16 %v43
  %v198 = vunpack.c.l.b16 %v44
  %v199 = vunpack.c.l.b16 %v45
  %v200 = vunpack.c.l.b16 %v46
  %v201 = vunpack.c.l.b16 %v47
  %v202 = vunpack.c.l.b16 %v48
  %v203 = vunpack.c.l.b16 %v49
  %v204 = vunpack.c.l.b16 %v50
  %v205 = vunpack.c.l.b16 %v51
  %v206 = vunpack.c.l.b16 %v52
  %v207 = vunpack.c.l.b16 %v53
  %v208 = vunpack.c.l.b16 %v54
  %v209 = vunpack.c.l.b16 %v55
  %v210 = vunpack.c.l.b16 %v56
  %v211 = vunpack.c.l.b16 %v57
  %v212 = vunpack.c.l.b16 %v58
  %v213 = vunpack.c.l.b16 %v59
  %v214 = vunpack.c.l.b16 %v60
  %v215 = vunpack.c.l.b16 %v61
  %v216 = vunpack.c.l.b16 %v62
  %v217 = vunpack.c.l.b16 %v63
  %v218 = vunpack.c.l.b16 %v64
  %v219 = vunpack.c.l.b16 %v65
  %v220 = vunpack.c.l.b16 %v66
  %v221 = vunpack.c.l.b16 %v67
  %v222 = vunpack.c.l.b16 %v68
  %v223 = vunpack.c.l.b16 %v69
  %v224 = vunpack.c.l.b16 %v70
  %v225 = vunpack.c.l.b16 %v71
  %v226 = vunpack.c.l.b16 %v72
  %v227 = vunpack.c.l.b16 %v73
  %v228 = vunpack.c.l.b16 %v74
  %v229 = vunpack.c.l.b16 %v75
  %v230 = vunpack.c.l.b16 %v76
  %v231 = vunpack.c.l.b16 %v77
  %v232 = vunpack.c.l.b16 %v78
  %v233 = vunpack.c.l.b16 %v79
  %v234 = vunpack.c.l.b16 %v80
  %v235 = vunpack.c.l.b16 %v81
  %v236 = vunpack.c.l.b16 %v82
  %v237 = vunpack.c.l.b16 %v83
  %v238 = vunpack.c.l.b16 %v84
  %v239 = vpack.c.b16 %v167, %v166
  %v240 = vpack.c.b16 %v169, %v168
  %v241 = vpack.c.b16 %v171, %v170
  %v242 = vpack.c.b16 %v173, %v172
  %v243 = vpack.c.b16 %v175, %v174
  %v244 = vpack.c.b16 %v177, %v176
  %v245 = vpack.c.b16 %v179, %v178
  %v246 = vpack.c.b16 %v181, %v180
  %v247 = vpack.c.b16 %v183, %v182
  %v248 = vpack.c.b16 %v185, %v184
  %v249 = vpack.c.b16 %v187, %v186
  %v250 = vpack.c.b16 %v189, %v188
  %v251 = vpack.c.b16 %v191, %v190
  %v252 = vpack.c.b16 %v193, %v192
  %v253 = vpack.c.b16 %v195, %v194
  %v254 = vpack.c.b16 %v197, %v196
  %v255 = vpack.c.b16 %v199, %v198
  %v256 = vpack.c.b16 %v201, %v200
  %v257 = vpack.c.b16 %v203, %v202
  %v258 = vpack.c.b16 %v205, %v204
  %v259 = vpack.c.b16 %v207, %v206
  %v260 = vpack.c.b16 %v209, %v208
  %v261 = vpack.c.b16 %v211, %v210
  %v262 = vpack.c.b16 %v213, %v212
  %v263 = vpack.c.b16 %v215, %v214
  %v264 = vpack.c.b16 %v217, %v216
  %v265 = vpack.c.b16 %v219, %v218
  %v266 = vpack.c.b16 %v221, %v220
  %v267 = vpack.c.b16 %v223, %v222
  %v268 = vpack.c.b16 %v225, %v224
  %v269 = vpack.c.b16 %v227, %v226
  %v270 = vpack.c.b16 %v229, %v228
  %v271 = vpack.c.b16 %v231, %v230
  %v272 = vpack.c.b16 %v233, %v232
  %v273 = vpack.c.b16 %v235, %v234
  %v274 = vpack.c.b16 %v237, %v236
  %v275 = vpack.c.b16 %v238, %v238
  %v284 = vunpack.c.l.b16 %v85
  %v285 = vunpack.c.l.b16 %v86
  %v286 = vunpack.c.l.b16 %v87
  %v287 = vunpack.c.l.b16 %v88
  %v288 = vunpack.c.l.b16 %v89
  %v289 = vunpack.c.l.b16 %v90
  %v290 = vunpack.c.l.b16 %v91
  %v291 = vunpack.c.l.b16 %v92
  %v292 = vpack.c.b16 %v285, %v284
  %v293 = vpack.c.b16 %v287, %v286
  %v294 = vpack.c.b16 %v289, %v288
  %v295 = vpack.c.b16 %v291, %v290
  %vm300 = vcmask 523264
  %v302 = vsel %vm300, %v239, 0
  %v305 = vsel %vm300, %v240, 0
  %v308 = vsel %vm300, %v241, 0
  %v311 = vsel %vm300, %v242, 0
  %v314 = vsel %vm300, %v243, 0
  %v317 = vsel %vm300, %v244, 0
  %v320 = vsel %vm300, %v245, 0
  %v323 = vsel %vm300, %v246, 0
  %v326 = vsel %vm300, %v247, 0
  %v329 = vsel %vm300, %v248, 0
  %v332 = vsel %vm300, %v249, 0
  %v335 = vsel %vm300, %v250, 0
  %v338 = vsel %vm300, %v251, 0
  %v341 = vsel %vm300, %v252, 0
  %v344 = vsel %vm300, %v253, 0
  %v347 = vsel %vm300, %v254, 0
  %v350 = vsel %vm300, %v255, 0
  %v353 = vsel %vm300, %v256, 0
  %v356 = vsel %vm300, %v257, 0
  %v359 = vsel %vm300, %v258, 0
  %v362 = vsel %vm300, %v259, 0
  %v365 = vsel %vm300, %v260, 0
  %v368 = vsel %vm300, %v261, 0
  %v371 = vsel %vm300, %v262, 0
  %v374 = vsel %vm300, %v263, 0
  %v377 = vsel %vm300, %v264, 0
  %v380 = vsel %vm300, %v265, 0
  %v383 = vsel %vm300, %v266, 0
  %v386 = vsel %vm300, %v267, 0
  %v389 = vsel %vm300, %v268, 0
  %v392 = vsel %vm300, %v269, 0
  %v395 = vsel %vm300, %v270, 0
  %v398 = vsel %vm300, %v271, 0
  %v401 = vsel %vm300, %v272, 0
  %v404 = vsel %vm300, %v273, 0
  %v407 = vsel %vm300, %v274, 0
  %v410 = vsel %vm300, %v275, 0
  %412 = vmatprep.subr.bf16.mxu0 0
  %413 = vmatpush1.bf16.msra.mxu0 %v292
  %414 = vmatprep.subr.bf16.mxu0 0
  %415 = vmatpush1.bf16.msra.mxu0 %v293
  %416 = vmatprep.subr.bf16.mxu0 0
  %417 = vmatpush1.bf16.msra.mxu0 %v294
  %418 = vmatprep.subr.bf16.mxu0 0
  %419 = vmatpush1.bf16.msra.mxu0 %v295
  %420 = vmatprep.subr.bf16.mxu0 0
  %421 = vmatpush1.bf16.msra.mxu0 0
  %422 = vmatprep.subr.bf16.mxu0 0
  %423 = vmatpush1.bf16.msra.mxu0 0
  %424 = vmatprep.subr.bf16.mxu0 0
  %425 = vmatpush1.bf16.msra.mxu0 0
  %426 = vmatprep.subr.bf16.mxu0 0
  %427 = vmatpush1.bf16.msra.mxu0 0
  %428 = vmatprep.subr.bf16.mxu0 0
  %429 = vmatpush1.bf16.msra.mxu0 0
  %430 = vmatprep.subr.bf16.mxu0 0
  %431 = vmatpush1.bf16.msra.mxu0 0
  %432 = vmatprep.subr.bf16.mxu0 0
  %433 = vmatpush1.bf16.msra.mxu0 0
  %434 = vmatprep.subr.bf16.mxu0 0
  %435 = vmatpush1.bf16.msra.mxu0 0
  %436 = vmatprep.subr.bf16.mxu0 0
  %437 = vmatpush1.bf16.msra.mxu0 0
  %438 = vmatprep.subr.bf16.mxu0 0
  %439 = vmatpush1.bf16.msra.mxu0 0
  %440 = vmatprep.subr.bf16.mxu0 0
  %441 = vmatpush1.bf16.msra.mxu0 0
  %442 = vmatprep.subr.bf16.mxu0 0
  %443 = vmatpush1.bf16.msra.mxu0 0
  %444 = vmatprep.mubr.bf16.mxu0 0
  %445 = vmatmul.mubr.bf16.gmra.mrb[0].mxu0 %v302
  %v446 = vpop.f32.mrb[0].mxu0
  %v447 = vadd.f32 0.0, %v446
  %v448 = vpop.f32.mrb[0].mxu0
  %v449 = vpop.f32.mrb[0].mxu0
  %v450 = vadd.f32 0.0, %v449
  %v451 = vpop.f32.mrb[0].mxu0
  %452 = vmatprep.mubr.bf16.mxu0 0
  %453 = vmatmul.mubr.bf16.gmra.mrb[0].mxu0 %v305
  %v454 = vpop.f32.mrb[0].mxu0
  %v455 = vadd.f32 0.0, %v454
  %v456 = vpop.f32.mrb[0].mxu0
  %v457 = vpop.f32.mrb[0].mxu0
  %v458 = vadd.f32 0.0, %v457
  %v459 = vpop.f32.mrb[0].mxu0
  %460 = vmatprep.mubr.bf16.mxu0 0
  %461 = vmatmul.mubr.bf16.gmra.mrb[0].mxu0 %v308
  %v462 = vpop.f32.mrb[0].mxu0
  %v463 = vadd.f32 0.0, %v462
  %v464 = vpop.f32.mrb[0].mxu0
  %v465 = vpop.f32.mrb[0].mxu0
  %v466 = vadd.f32 0.0, %v465
  %v467 = vpop.f32.mrb[0].mxu0
  %468 = vmatprep.mubr.bf16.mxu0 0
  %469 = vmatmul.mubr.bf16.gmra.mrb[0].mxu0 %v311
  %v470 = vpop.f32.mrb[0].mxu0
  %v471 = vadd.f32 0.0, %v470
  %v472 = vpop.f32.mrb[0].mxu0
  %v473 = vpop.f32.mrb[0].mxu0
  %v474 = vadd.f32 0.0, %v473
  %v475 = vpop.f32.mrb[0].mxu0
  %476 = vmatprep.mubr.bf16.mxu0 0
  %477 = vmatmul.mubr.bf16.gmra.mrb[0].mxu0 %v314
  %v478 = vpop.f32.mrb[0].mxu0
  %v479 = vadd.f32 0.0, %v478
  %v480 = vpop.f32.mrb[0].mxu0
  %v481 = vpop.f32.mrb[0].mxu0
  %v482 = vadd.f32 0.0, %v481
  %v483 = vpop.f32.mrb[0].mxu0
  %484 = vmatprep.mubr.bf16.mxu0 0
  %485 = vmatmul.mubr.bf16.gmra.mrb[0].mxu0 %v317
  %v486 = vpop.f32.mrb[0].mxu0
  %v487 = vadd.f32 0.0, %v486
  %v488 = vpop.f32.mrb[0].mxu0
  %v489 = vpop.f32.mrb[0].mxu0
  %v490 = vadd.f32 0.0, %v489
  %v491 = vpop.f32.mrb[0].mxu0
  %492 = vmatprep.mubr.bf16.mxu0 0
  %493 = vmatmul.mubr.bf16.gmra.mrb[0].mxu0 %v320
  %v494 = vpop.f32.mrb[0].mxu0
  %v495 = vadd.f32 0.0, %v494
  %v496 = vpop.f32.mrb[0].mxu0
  %v497 = vpop.f32.mrb[0].mxu0
  %v498 = vadd.f32 0.0, %v497
  %v499 = vpop.f32.mrb[0].mxu0
  %500 = vmatprep.mubr.bf16.mxu0 0
  %501 = vmatmul.mubr.bf16.gmra.mrb[0].mxu0 %v323
  %v502 = vpop.f32.mrb[0].mxu0
  %v503 = vadd.f32 0.0, %v502
  %v504 = vpop.f32.mrb[0].mxu0
  %v505 = vpop.f32.mrb[0].mxu0
  %v506 = vadd.f32 0.0, %v505
  %v507 = vpop.f32.mrb[0].mxu0
  %508 = vmatprep.mubr.bf16.mxu0 0
  %509 = vmatmul.mubr.bf16.gmra.mrb[0].mxu0 %v326
  %v510 = vpop.f32.mrb[0].mxu0
  %v511 = vadd.f32 0.0, %v510
  %v512 = vpop.f32.mrb[0].mxu0
  %v513 = vpop.f32.mrb[0].mxu0
  %v514 = vadd.f32 0.0, %v513
  %v515 = vpop.f32.mrb[0].mxu0
  %516 = vmatprep.mubr.bf16.mxu0 0
  %517 = vmatmul.mubr.bf16.gmra.mrb[0].mxu0 %v329
  %v518 = vpop.f32.mrb[0].mxu0
  %v519 = vadd.f32 0.0, %v518
  %v520 = vpop.f32.mrb[0].mxu0
  %v521 = vpop.f32.mrb[0].mxu0
  %v522 = vadd.f32 0.0, %v521
  %v523 = vpop.f32.mrb[0].mxu0
  %524 = vmatprep.mubr.bf16.mxu0 0
  %525 = vmatmul.mubr.bf16.gmra.mrb[0].mxu0 %v332
  %v526 = vpop.f32.mrb[0].mxu0
  %v527 = vadd.f32 0.0, %v526
  %v528 = vpop.f32.mrb[0].mxu0
  %v529 = vpop.f32.mrb[0].mxu0
  %v530 = vadd.f32 0.0, %v529
  %v531 = vpop.f32.mrb[0].mxu0
  %532 = vmatprep.mubr.bf16.mxu0 0
  %533 = vmatmul.mubr.bf16.gmra.mrb[0].mxu0 %v335
  %v534 = vpop.f32.mrb[0].mxu0
  %v535 = vadd.f32 0.0, %v534
  %v536 = vpop.f32.mrb[0].mxu0
  %v537 = vpop.f32.mrb[0].mxu0
  %v538 = vadd.f32 0.0, %v537
  %v539 = vpop.f32.mrb[0].mxu0
  %540 = vmatprep.mubr.bf16.mxu0 0
  %541 = vmatmul.mubr.bf16.gmra.mrb[0].mxu0 %v338
  %v542 = vpop.f32.mrb[0].mxu0
  %v543 = vadd.f32 0.0, %v542
  %v544 = vpop.f32.mrb[0].mxu0
  %v545 = vpop.f32.mrb[0].mxu0
  %v546 = vadd.f32 0.0, %v545
  %v547 = vpop.f32.mrb[0].mxu0
  %548 = vmatprep.mubr.bf16.mxu0 0
  %549 = vmatmul.mubr.bf16.gmra.mrb[0].mxu0 %v341
  %v550 = vpop.f32.mrb[0].mxu0
  %v551 = vadd.f32 0.0, %v550
  %v552 = vpop.f32.mrb[0].mxu0
  %v553 = vpop.f32.mrb[0].mxu0
  %v554 = vadd.f32 0.0, %v553
  %v555 = vpop.f32.mrb[0].mxu0
  %556 = vmatprep.mubr.bf16.mxu0 0
  %557 = vmatmul.mubr.bf16.gmra.mrb[0].mxu0 %v344
  %v558 = vpop.f32.mrb[0].mxu0
  %v559 = vadd.f32 0.0, %v558
  %v560 = vpop.f32.mrb[0].mxu0
  %v561 = vpop.f32.mrb[0].mxu0
  %v562 = vadd.f32 0.0, %v561
  %v563 = vpop.f32.mrb[0].mxu0
  %564 = vmatprep.mubr.bf16.mxu0 0
  %565 = vmatmul.mubr.bf16.gmra.mrb[0].mxu0 %v347
  %v566 = vpop.f32.mrb[0].mxu0
  %v567 = vadd.f32 0.0, %v566
  %v568 = vpop.f32.mrb[0].mxu0
  %v569 = vpop.f32.mrb[0].mxu0
  %v570 = vadd.f32 0.0, %v569
  %v571 = vpop.f32.mrb[0].mxu0
  %572 = vmatprep.mubr.bf16.mxu0 0
  %573 = vmatmul.mubr.bf16.gmra.mrb[0].mxu0 %v350
  %v574 = vpop.f32.mrb[0].mxu0
  %v575 = vadd.f32 0.0, %v574
  %v576 = vpop.f32.mrb[0].mxu0
  %v577 = vpop.f32.mrb[0].mxu0
  %v578 = vadd.f32 0.0, %v577
  %v579 = vpop.f32.mrb[0].mxu0
  %580 = vmatprep.mubr.bf16.mxu0 0
  %581 = vmatmul.mubr.bf16.gmra.mrb[0].mxu0 %v353
  %v582 = vpop.f32.mrb[0].mxu0
  %v583 = vadd.f32 0.0, %v582
  %v584 = vpop.f32.mrb[0].mxu0
  %v585 = vpop.f32.mrb[0].mxu0
  %v586 = vadd.f32 0.0, %v585
  %v587 = vpop.f32.mrb[0].mxu0
  %588 = vmatprep.mubr.bf16.mxu0 0
  %589 = vmatmul.mubr.bf16.gmra.mrb[0].mxu0 %v356
  %v590 = vpop.f32.mrb[0].mxu0
  %v591 = vadd.f32 0.0, %v590
  %v592 = vpop.f32.mrb[0].mxu0
  %v593 = vpop.f32.mrb[0].mxu0
  %v594 = vadd.f32 0.0, %v593
  %v595 = vpop.f32.mrb[0].mxu0
  %596 = vmatprep.mubr.bf16.mxu0 0
  %597 = vmatmul.mubr.bf16.gmra.mrb[0].mxu0 %v359
  %v598 = vpop.f32.mrb[0].mxu0
  %v599 = vadd.f32 0.0, %v598
  %v600 = vpop.f32.mrb[0].mxu0
  %v601 = vpop.f32.mrb[0].mxu0
  %v602 = vadd.f32 0.0, %v601
  %v603 = vpop.f32.mrb[0].mxu0
  %604 = vmatprep.mubr.bf16.mxu0 0
  %605 = vmatmul.mubr.bf16.gmra.mrb[0].mxu0 %v362
  %v606 = vpop.f32.mrb[0].mxu0
  %v607 = vadd.f32 0.0, %v606
  %v608 = vpop.f32.mrb[0].mxu0
  %v609 = vpop.f32.mrb[0].mxu0
  %v610 = vadd.f32 0.0, %v609
  %v611 = vpop.f32.mrb[0].mxu0
  %612 = vmatprep.mubr.bf16.mxu0 0
  %613 = vmatmul.mubr.bf16.gmra.mrb[0].mxu0 %v365
  %v614 = vpop.f32.mrb[0].mxu0
  %v615 = vadd.f32 0.0, %v614
  %v616 = vpop.f32.mrb[0].mxu0
  %v617 = vpop.f32.mrb[0].mxu0
  %v618 = vadd.f32 0.0, %v617
  %v619 = vpop.f32.mrb[0].mxu0
  %620 = vmatprep.mubr.bf16.mxu0 0
  %621 = vmatmul.mubr.bf16.gmra.mrb[0].mxu0 %v368
  %v622 = vpop.f32.mrb[0].mxu0
  %v623 = vadd.f32 0.0, %v622
  %v624 = vpop.f32.mrb[0].mxu0
  %v625 = vpop.f32.mrb[0].mxu0
  %v626 = vadd.f32 0.0, %v625
  %v627 = vpop.f32.mrb[0].mxu0
  %628 = vmatprep.mubr.bf16.mxu0 0
  %629 = vmatmul.mubr.bf16.gmra.mrb[0].mxu0 %v371
  %v630 = vpop.f32.mrb[0].mxu0
  %v631 = vadd.f32 0.0, %v630
  %v632 = vpop.f32.mrb[0].mxu0
  %v633 = vpop.f32.mrb[0].mxu0
  %v634 = vadd.f32 0.0, %v633
  %v635 = vpop.f32.mrb[0].mxu0
  %636 = vmatprep.mubr.bf16.mxu0 0
  %637 = vmatmul.mubr.bf16.gmra.mrb[0].mxu0 %v374
  %v638 = vpop.f32.mrb[0].mxu0
  %v639 = vadd.f32 0.0, %v638
  %v640 = vpop.f32.mrb[0].mxu0
  %v641 = vpop.f32.mrb[0].mxu0
  %v642 = vadd.f32 0.0, %v641
  %v643 = vpop.f32.mrb[0].mxu0
  %644 = vmatprep.mubr.bf16.mxu0 0
  %645 = vmatmul.mubr.bf16.gmra.mrb[0].mxu0 %v377
  %v646 = vpop.f32.mrb[0].mxu0
  %v647 = vadd.f32 0.0, %v646
  %v648 = vpop.f32.mrb[0].mxu0
  %v649 = vpop.f32.mrb[0].mxu0
  %v650 = vadd.f32 0.0, %v649
  %v651 = vpop.f32.mrb[0].mxu0
  %652 = vmatprep.mubr.bf16.mxu0 0
  %653 = vmatmul.mubr.bf16.gmra.mrb[0].mxu0 %v380
  %v654 = vpop.f32.mrb[0].mxu0
  %v655 = vadd.f32 0.0, %v654
  %v656 = vpop.f32.mrb[0].mxu0
  %v657 = vpop.f32.mrb[0].mxu0
  %v658 = vadd.f32 0.0, %v657
  %v659 = vpop.f32.mrb[0].mxu0
  %660 = vmatprep.mubr.bf16.mxu0 0
  %661 = vmatmul.mubr.bf16.gmra.mrb[0].mxu0 %v383
  %v662 = vpop.f32.mrb[0].mxu0
  %v663 = vadd.f32 0.0, %v662
  %v664 = vpop.f32.mrb[0].mxu0
  %v665 = vpop.f32.mrb[0].mxu0
  %v666 = vadd.f32 0.0, %v665
  %v667 = vpop.f32.mrb[0].mxu0
  %668 = vmatprep.mubr.bf16.mxu0 0
  %669 = vmatmul.mubr.bf16.gmra.mrb[0].mxu0 %v386
  %v670 = vpop.f32.mrb[0].mxu0
  %v671 = vadd.f32 0.0, %v670
  %v672 = vpop.f32.mrb[0].mxu0
  %v673 = vpop.f32.mrb[0].mxu0
  %v674 = vadd.f32 0.0, %v673
  %v675 = vpop.f32.mrb[0].mxu0
  %676 = vmatprep.mubr.bf16.mxu0 0
  %677 = vmatmul.mubr.bf16.gmra.mrb[0].mxu0 %v389
  %v678 = vpop.f32.mrb[0].mxu0
  %v679 = vadd.f32 0.0, %v678
  %v680 = vpop.f32.mrb[0].mxu0
  %v681 = vpop.f32.mrb[0].mxu0
  %v682 = vadd.f32 0.0, %v681
  %v683 = vpop.f32.mrb[0].mxu0
  %684 = vmatprep.mubr.bf16.mxu0 0
  %685 = vmatmul.mubr.bf16.gmra.mrb[0].mxu0 %v392
  %v686 = vpop.f32.mrb[0].mxu0
  %v687 = vadd.f32 0.0, %v686
  %v688 = vpop.f32.mrb[0].mxu0
  %v689 = vpop.f32.mrb[0].mxu0
  %v690 = vadd.f32 0.0, %v689
  %v691 = vpop.f32.mrb[0].mxu0
  %692 = vmatprep.mubr.bf16.mxu0 0
  %693 = vmatmul.mubr.bf16.gmra.mrb[0].mxu0 %v395
  %v694 = vpop.f32.mrb[0].mxu0
  %v695 = vadd.f32 0.0, %v694
  %v696 = vpop.f32.mrb[0].mxu0
  %v697 = vpop.f32.mrb[0].mxu0
  %v698 = vadd.f32 0.0, %v697
  %v699 = vpop.f32.mrb[0].mxu0
  %700 = vmatprep.mubr.bf16.mxu0 0
  %701 = vmatmul.mubr.bf16.gmra.mrb[0].mxu0 %v398
  %v702 = vpop.f32.mrb[0].mxu0
  %v703 = vadd.f32 0.0, %v702
  %v704 = vpop.f32.mrb[0].mxu0
  %v705 = vpop.f32.mrb[0].mxu0
  %v706 = vadd.f32 0.0, %v705
  %v707 = vpop.f32.mrb[0].mxu0
  %708 = vmatprep.mubr.bf16.mxu0 0
  %709 = vmatmul.mubr.bf16.gmra.mrb[0].mxu0 %v401
  %v710 = vpop.f32.mrb[0].mxu0
  %v711 = vadd.f32 0.0, %v710
  %v712 = vpop.f32.mrb[0].mxu0
  %v713 = vpop.f32.mrb[0].mxu0
  %v714 = vadd.f32 0.0, %v713
  %v715 = vpop.f32.mrb[0].mxu0
  %716 = vmatprep.mubr.bf16.mxu0 0
  %717 = vmatmul.mubr.bf16.gmra.mrb[0].mxu0 %v404
  %v718 = vpop.f32.mrb[0].mxu0
  %v719 = vadd.f32 0.0, %v718
  %v720 = vpop.f32.mrb[0].mxu0
  %v721 = vpop.f32.mrb[0].mxu0
  %v722 = vadd.f32 0.0, %v721
  %v723 = vpop.f32.mrb[0].mxu0
  %724 = vmatprep.mubr.bf16.mxu0 0
  %725 = vmatmul.mubr.bf16.gmra.mrb[0].mxu0 %v407
  %v726 = vpop.f32.mrb[0].mxu0
  %v727 = vadd.f32 0.0, %v726
  %v728 = vpop.f32.mrb[0].mxu0
  %v729 = vpop.f32.mrb[0].mxu0
  %v730 = vadd.f32 0.0, %v729
  %v731 = vpop.f32.mrb[0].mxu0
  %732 = vmatprep.mubr.bf16.mxu0 0
  %733 = vmatmul.mubr.bf16.gmra.mrb[0].mxu0 %v410
  %v734 = vpop.f32.mrb[0].mxu0
  %v735 = vadd.f32 0.0, %v734
  %v736 = vpop.f32.mrb[0].mxu0
  %v737 = vpop.f32.mrb[0].mxu0
  %v738 = vpop.f32.mrb[0].mxu0
  %739 = vdwg.mxu0
  %vm740 = vcmask 261120
  %741 = vst.msk [vmem:[%s2] sm:$0xff] %vm740, %v447
  %742 = vst.msk [vmem:[%s2 + $0x8] sm:$0xff] %vm740, %v450
  %743 = vst.msk [vmem:[%s2 + $0x10] sm:$0xff] %vm740, %v455
  %744 = vst.msk [vmem:[%s2 + $0x18] sm:$0xff] %vm740, %v458
  %745 = vst.msk [vmem:[%s2 + $0x20] sm:$0xff] %vm740, %v463
  %746 = vst.msk [vmem:[%s2 + $0x28] sm:$0xff] %vm740, %v466
  %747 = vst.msk [vmem:[%s2 + $0x30] sm:$0xff] %vm740, %v471
  %748 = vst.msk [vmem:[%s2 + $0x38] sm:$0xff] %vm740, %v474
  %749 = vst.msk [vmem:[%s2 + $0x40] sm:$0xff] %vm740, %v479
  %750 = vst.msk [vmem:[%s2 + $0x48] sm:$0xff] %vm740, %v482
  %751 = vst.msk [vmem:[%s2 + $0x50] sm:$0xff] %vm740, %v487
  %752 = vst.msk [vmem:[%s2 + $0x58] sm:$0xff] %vm740, %v490
  %753 = vst.msk [vmem:[%s2 + $0x60] sm:$0xff] %vm740, %v495
  %754 = vst.msk [vmem:[%s2 + $0x68] sm:$0xff] %vm740, %v498
  %755 = vst.msk [vmem:[%s2 + $0x70] sm:$0xff] %vm740, %v503
  %756 = vst.msk [vmem:[%s2 + $0x78] sm:$0xff] %vm740, %v506
  %757 = vst.msk [vmem:[%s2 + $0x80] sm:$0xff] %vm740, %v511
  %758 = vst.msk [vmem:[%s2 + $0x88] sm:$0xff] %vm740, %v514
  %759 = vst.msk [vmem:[%s2 + $0x90] sm:$0xff] %vm740, %v519
  %760 = vst.msk [vmem:[%s2 + $0x98] sm:$0xff] %vm740, %v522
  %761 = vst.msk [vmem:[%s2 + $0xa0] sm:$0xff] %vm740, %v527
  %762 = vst.msk [vmem:[%s2 + $0xa8] sm:$0xff] %vm740, %v530
  %763 = vst.msk [vmem:[%s2 + $0xb0] sm:$0xff] %vm740, %v535
  %764 = vst.msk [vmem:[%s2 + $0xb8] sm:$0xff] %vm740, %v538
  %765 = vst.msk [vmem:[%s2 + $0xc0] sm:$0xff] %vm740, %v543
  %766 = vst.msk [vmem:[%s2 + $0xc8] sm:$0xff] %vm740, %v546
  %767 = vst.msk [vmem:[%s2 + $0xd0] sm:$0xff] %vm740, %v551
  %768 = vst.msk [vmem:[%s2 + $0xd8] sm:$0xff] %vm740, %v554
  %769 = vst.msk [vmem:[%s2 + $0xe0] sm:$0xff] %vm740, %v559
  %770 = vst.msk [vmem:[%s2 + $0xe8] sm:$0xff] %vm740, %v562
  %771 = vst.msk [vmem:[%s2 + $0xf0] sm:$0xff] %vm740, %v567
  %772 = vst.msk [vmem:[%s2 + $0xf8] sm:$0xff] %vm740, %v570
  %773 = vst.msk [vmem:[%s2 + $0x100] sm:$0xff] %vm740, %v575
  %774 = vst.msk [vmem:[%s2 + $0x108] sm:$0xff] %vm740, %v578
  %775 = vst.msk [vmem:[%s2 + $0x110] sm:$0xff] %vm740, %v583
  %776 = vst.msk [vmem:[%s2 + $0x118] sm:$0xff] %vm740, %v586
  %777 = vst.msk [vmem:[%s2 + $0x120] sm:$0xff] %vm740, %v591
  %778 = vst.msk [vmem:[%s2 + $0x128] sm:$0xff] %vm740, %v594
  %779 = vst.msk [vmem:[%s2 + $0x130] sm:$0xff] %vm740, %v599
  %780 = vst.msk [vmem:[%s2 + $0x138] sm:$0xff] %vm740, %v602
  %781 = vst.msk [vmem:[%s2 + $0x140] sm:$0xff] %vm740, %v607
  %782 = vst.msk [vmem:[%s2 + $0x148] sm:$0xff] %vm740, %v610
  %783 = vst.msk [vmem:[%s2 + $0x150] sm:$0xff] %vm740, %v615
  %784 = vst.msk [vmem:[%s2 + $0x158] sm:$0xff] %vm740, %v618
  %785 = vst.msk [vmem:[%s2 + $0x160] sm:$0xff] %vm740, %v623
  %786 = vst.msk [vmem:[%s2 + $0x168] sm:$0xff] %vm740, %v626
  %787 = vst.msk [vmem:[%s2 + $0x170] sm:$0xff] %vm740, %v631
  %788 = vst.msk [vmem:[%s2 + $0x178] sm:$0xff] %vm740, %v634
  %789 = vst.msk [vmem:[%s2 + $0x180] sm:$0xff] %vm740, %v639
  %790 = vst.msk [vmem:[%s2 + $0x188] sm:$0xff] %vm740, %v642
  %791 = vst.msk [vmem:[%s2 + $0x190] sm:$0xff] %vm740, %v647
  %792 = vst.msk [vmem:[%s2 + $0x198] sm:$0xff] %vm740, %v650
  %793 = vst.msk [vmem:[%s2 + $0x1a0] sm:$0xff] %vm740, %v655
  %794 = vst.msk [vmem:[%s2 + $0x1a8] sm:$0xff] %vm740, %v658
  %795 = vst.msk [vmem:[%s2 + $0x1b0] sm:$0xff] %vm740, %v663
  %796 = vst.msk [vmem:[%s2 + $0x1b8] sm:$0xff] %vm740, %v666
  %797 = vst.msk [vmem:[%s2 + $0x1c0] sm:$0xff] %vm740, %v671
  %798 = vst.msk [vmem:[%s2 + $0x1c8] sm:$0xff] %vm740, %v674
  %799 = vst.msk [vmem:[%s2 + $0x1d0] sm:$0xff] %vm740, %v679
  %800 = vst.msk [vmem:[%s2 + $0x1d8] sm:$0xff] %vm740, %v682
  %801 = vst.msk [vmem:[%s2 + $0x1e0] sm:$0xff] %vm740, %v687
  %802 = vst.msk [vmem:[%s2 + $0x1e8] sm:$0xff] %vm740, %v690
  %803 = vst.msk [vmem:[%s2 + $0x1f0] sm:$0xff] %vm740, %v695
  %804 = vst.msk [vmem:[%s2 + $0x1f8] sm:$0xff] %vm740, %v698
  %805 = vst.msk [vmem:[%s2 + $0x200] sm:$0xff] %vm740, %v703
  %806 = vst.msk [vmem:[%s2 + $0x208] sm:$0xff] %vm740, %v706
  %807 = vst.msk [vmem:[%s2 + $0x210] sm:$0xff] %vm740, %v711
  %808 = vst.msk [vmem:[%s2 + $0x218] sm:$0xff] %vm740, %v714
  %809 = vst.msk [vmem:[%s2 + $0x220] sm:$0xff] %vm740, %v719
  %810 = vst.msk [vmem:[%s2 + $0x228] sm:$0xff] %vm740, %v722
  %811 = vst.msk [vmem:[%s2 + $0x230] sm:$0xff] %vm740, %v727
  %812 = vst.msk [vmem:[%s2 + $0x238] sm:$0xff] %vm740, %v730
  %813 = vst.msk [vmem:[%s2 + $0x240] sm:$0xff] %vm740, %v735
  // Predicated region
  $region10: #{dec_forward.7} parent=0 // pred_check
    _
  $region11: #{dec_forward.7} parent=0 // pred_check_branch
    %815 = sbr.rel (0) target = $region13
  $region12: #{dec_forward.7} parent=0 // pred_region
    _
  $region13: #{dec_forward.7} parent=0 // pred_fallthru
    _
  // Predicated region
  $region14: #{dec_forward.7} parent=0 // pred_check
    _
  $region15: #{dec_forward.7} parent=0 // pred_check_branch
    %817 = sbr.rel (0) target = $region17
  $region16: #{dec_forward.7} parent=0 // pred_region
    _
  $region17: #{dec_forward.7} parent=0 // pred_fallthru
    _

// kernel: tile.38
$region0: #{tile.38}
  #allocation0 [shape = 's32[1]{0}', space=sflag, size = 0x4, scoped, tag = 'scoped memory for tile.38']
  %s0 = inlined_call_operand.vmem [shape: f32[8], index: 0, kind: input, shape index: {}]
  %s1 = inlined_call_operand.vmem [shape: f32[32,8], index: 1, kind: output, shape index: {}]
  // Predicated region
  $region2: #{tile.38} parent=0 // pred_check
    _
  $region3: #{tile.38} parent=0 // pred_check_branch
    %3 = sbr.rel (0) target = $region5
  $region4: #{tile.38} parent=0 // pred_region
    _
  $region5: #{tile.38} parent=0 // pred_fallthru
    _
  %v4 = vld [vmem:[%s0] ss:$0 sm:$0xff]
  %5 = vst [vmem:[%s1] sm:$0xff] %v4
  %s6 = scalar_lea.vmem %s1, 8
  %7 = vst [vmem:[%s6] sm:$0xff] %v4
  %s8 = scalar_lea.vmem %s1, 16
  %9 = vst [vmem:[%s8] sm:$0xff] %v4
  %s10 = scalar_lea.vmem %s1, 24
  %11 = vst [vmem:[%s10] sm:$0xff] %v4

// kernel: tile.39
$region0: #{tile.39}
  %s0 = inlined_call_operand.vmem [shape: f32[32,8], index: 0, kind: input, shape index: {}]
  %s1 = inlined_call_operand.vmem [shape: f32[1,256], index: 1, kind: output, shape index: {}]
  $region1: #{tile.39} parent=0
    #allocation0 [shape = 'u8[8192]{0}', space=vmem, size = 0x2000, scoped, tag = 'scoped mem for output reshape']
    %s2 = smov 3
    %v3 = vld [vmem:[%s0] ss:$16 sm:%s2]
    %vm4 = vcmask 64512
    %5 = vst.msk [vmem:[#allocation0] ss:$8 sm:$0x3] %vm4, %v3
    %s6 = scalar_lea.vmem %s0, 15
    %s7 = smov 3
    %v8 = vld [vmem:[%s6] ss:$16 sm:%s7]
    %9 = vrot.lane.b32.xlu0 %v8, 120
    %v10 = vpop.permute.xlu0 %9
    %vm11 = vcmask 1048512
    %12 = vst.msk [vmem:[#allocation0] ss:$8 sm:$0x3] %vm11, %v10
    %s13 = scalar_lea.vmem %s0, 14
    %s14 = smov 3
    %v15 = vld [vmem:[%s13] ss:$16 sm:%s14]
    %16 = vrot.lane.b32.xlu0 %v15, 112
    %v17 = vpop.permute.xlu0 %16
    %vm18 = vcmask 982912
    %19 = vst.msk [vmem:[#allocation0] ss:$8 sm:$0x3] %vm18, %v17
    %s20 = scalar_lea.vmem %s0, 13
    %s21 = smov 3
    %v22 = vld [vmem:[%s20] ss:$16 sm:%s21]
    %23 = vrot.lane.b32.xlu0 %v22, 104
    %v24 = vpop.permute.xlu0 %23
    %vm25 = vcmask 917312
    %26 = vst.msk [vmem:[#allocation0] ss:$8 sm:$0x3] %vm25, %v24
    %s27 = scalar_lea.vmem %s0, 12
    %s28 = smov 3
    %v29 = vld [vmem:[%s27] ss:$16 sm:%s28]
    %30 = vrot.lane.b32.xlu0 %v29, 96
    %v31 = vpop.permute.xlu0 %30
    %vm32 = vcmask 851712
    %33 = vst.msk [vmem:[#allocation0] ss:$8 sm:$0x3] %vm32, %v31
    %s34 = scalar_lea.vmem %s0, 11
    %s35 = smov 3
    %v36 = vld [vmem:[%s34] ss:$16 sm:%s35]
    %37 = vrot.lane.b32.xlu0 %v36, 88
    %v38 = vpop.permute.xlu0 %37
    %vm39 = vcmask 786112
    %40 = vst.msk [vmem:[#allocation0] ss:$8 sm:$0x3] %vm39, %v38
    %s41 = scalar_lea.vmem %s0, 10
    %s42 = smov 3
    %v43 = vld [vmem:[%s41] ss:$16 sm:%s42]
    %44 = vrot.lane.b32.xlu0 %v43, 80
    %v45 = vpop.permute.xlu0 %44
    %vm46 = vcmask 720512
    %47 = vst.msk [vmem:[#allocation0] ss:$8 sm:$0x3] %vm46, %v45
    %s48 = scalar_lea.vmem %s0, 9
    %s49 = smov 3
    %v50 = vld [vmem:[%s48] ss:$16 sm:%s49]
    %51 = vrot.lane.b32.xlu0 %v50, 72
    %v52 = vpop.permute.xlu0 %51
    %vm53 = vcmask 654912
    %54 = vst.msk [vmem:[#allocation0] ss:$8 sm:$0x3] %vm53, %v52
    %s55 = scalar_lea.vmem %s0, 8
    %s56 = smov 3
    %v57 = vld [vmem:[%s55] ss:$16 sm:%s56]
    %58 = vrot.lane.b32.xlu0 %v57, 64
    %v59 = vpop.permute.xlu0 %58
    %vm60 = vcmask 589312
    %61 = vst.msk [vmem:[#allocation0] ss:$8 sm:$0x3] %vm60, %v59
    %s62 = scalar_lea.vmem %s0, 7
    %s63 = smov 3
    %v64 = vld [vmem:[%s62] ss:$16 sm:%s63]
    %65 = vrot.lane.b32.xlu0 %v64, 56
    %v66 = vpop.permute.xlu0 %65
    %vm67 = vcmask 523712
    %68 = vst.msk [vmem:[#allocation0] ss:$8 sm:$0x3] %vm67, %v66
    %s69 = scalar_lea.vmem %s0, 6
    %s70 = smov 3
    %v71 = vld [vmem:[%s69] ss:$16 sm:%s70]
    %72 = vrot.lane.b32.xlu0 %v71, 48
    %v73 = vpop.permute.xlu0 %72
    %vm74 = vcmask 458112
    %75 = vst.msk [vmem:[#allocation0] ss:$8 sm:$0x3] %vm74, %v73
    %s76 = scalar_lea.vmem %s0, 5
    %s77 = smov 3
    %v78 = vld [vmem:[%s76] ss:$16 sm:%s77]
    %79 = vrot.lane.b32.xlu0 %v78, 40
    %v80 = vpop.permute.xlu0 %79
    %vm81 = vcmask 392512
    %82 = vst.msk [vmem:[#allocation0] ss:$8 sm:$0x3] %vm81, %v80
    %s83 = scalar_lea.vmem %s0, 4
    %s84 = smov 3
    %v85 = vld [vmem:[%s83] ss:$16 sm:%s84]
    %86 = vrot.lane.b32.xlu0 %v85, 32
    %v87 = vpop.permute.xlu0 %86
    %vm88 = vcmask 326912
    %89 = vst.msk [vmem:[#allocation0] ss:$8 sm:$0x3] %vm88, %v87
    %s90 = scalar_lea.vmem %s0, 3
    %s91 = smov 3
    %v92 = vld [vmem:[%s90] ss:$16 sm:%s91]
    %93 = vrot.lane.b32.xlu0 %v92, 24
    %v94 = vpop.permute.xlu0 %93
    %vm95 = vcmask 261312
    %96 = vst.msk [vmem:[#allocation0] ss:$8 sm:$0x3] %vm95, %v94
    %s97 = scalar_lea.vmem %s0, 2
    %s98 = smov 3
    %v99 = vld [vmem:[%s97] ss:$16 sm:%s98]
    %100 = vrot.lane.b32.xlu0 %v99, 16
    %v101 = vpop.permute.xlu0 %100
    %vm102 = vcmask 195712
    %103 = vst.msk [vmem:[#allocation0] ss:$8 sm:$0x3] %vm102, %v101
    %s104 = scalar_lea.vmem %s0, 1
    %s105 = smov 3
    %v106 = vld [vmem:[%s104] ss:$16 sm:%s105]
    %107 = vrot.lane.b32.xlu0 %v106, 8
    %v108 = vpop.permute.xlu0 %107
    %vm109 = vcmask 130112
    %110 = vst.msk [vmem:[#allocation0] ss:$8 sm:$0x3] %vm109, %v108
    %s112 = sshllo.u32 0, 1
    %v114 = vld [vmem:[#allocation0] sm:%s112]
    %s115 = sshllo.u32 0, 1
    %116 = vst [vmem:[%s1] sm:%s115] %v114
    %s117 = scalar_lea.vmem [#allocation0], 8
    %v118 = vld [vmem:[%s117] sm:%s112]
    %s119 = sshllo.u32 0, 1
    %s120 = scalar_lea.vmem %s1, 1
    %121 = vst [vmem:[%s120] sm:%s119] %v118

// kernel: dec_forward.8
$region0: #{dec_forward.8}
  #allocation0 [shape = 'u32[]', space=smem, size = 0x4, offset = 0x4, fixed_abs, tag = 'smem constant byte address 0x4 - core index']
  #allocation1 [shape = 'u32[144,128]{1,0:T(1,128)}', space=vmem, size = 0x12000, scoped, tag = 'internal scratch']
  %s0 = inlined_call_operand.vmem [shape: f32[64,256], index: 0, kind: input, shape index: {}]
  %s1 = inlined_call_operand.vmem [shape: f32[1,256], index: 1, kind: input, shape index: {}]
  %s2 = inlined_call_operand.vmem [shape: f32[1,256], index: 2, kind: input, shape index: {}]
  %s3 = inlined_call_operand.vmem [shape: bf16[64,256], index: 3, kind: output, shape index: {}]
  %s4 = sld [smem:[#allocation0]]
  $region22: #{dec_forward.8} parent=0
    _
  %s6 = ssub.s32 1, %s4
  %s7 = scalar_select 0, %s6, %s4
  // Predicated region
  $region2: #{dec_forward.8} parent=0 // pred_check
    _
  $region3: #{dec_forward.8} parent=0 // pred_check_branch
    %9 = sbr.rel (0) target = $region5
  $region4: #{dec_forward.8} parent=0 // pred_region
    _
  $region5: #{dec_forward.8} parent=0 // pred_fallthru
    _
  // Predicated region
  $region6: #{dec_forward.8} parent=0 // pred_check
    _
  $region7: #{dec_forward.8} parent=0 // pred_check_branch
    %11 = sbr.rel (0) target = $region9
  $region8: #{dec_forward.8} parent=0 // pred_region
    _
  $region9: #{dec_forward.8} parent=0 // pred_fallthru
    _
  // Predicated region
  $region10: #{dec_forward.8} parent=0 // pred_check
    _
  $region11: #{dec_forward.8} parent=0 // pred_check_branch
    %13 = sbr.rel (0) target = $region13
  $region12: #{dec_forward.8} parent=0 // pred_region
    _
  $region13: #{dec_forward.8} parent=0 // pred_fallthru
    _
  %v14 = vld [vmem:[%s0] sm:$0xff]
  %v15 = vld [vmem:[%s0 + $0x8] sm:$0xff]
  %v16 = vld [vmem:[%s0 + $0x10] sm:$0xff]
  %v17 = vld [vmem:[%s0 + $0x18] sm:$0xff]
  %v18 = vld [vmem:[%s0 + $0x20] sm:$0xff]
  %v19 = vld [vmem:[%s0 + $0x28] sm:$0xff]
  %v20 = vld [vmem:[%s0 + $0x30] sm:$0xff]
  %v21 = vld [vmem:[%s0 + $0x38] sm:$0xff]
  %v22 = vld [vmem:[%s0 + $0x40] sm:$0xff]
  %v23 = vld [vmem:[%s0 + $0x48] sm:$0xff]
  %v24 = vld [vmem:[%s0 + $0x50] sm:$0xff]
  %v25 = vld [vmem:[%s0 + $0x58] sm:$0xff]
  %v26 = vld [vmem:[%s0 + $0x60] sm:$0xff]
  %v27 = vld [vmem:[%s0 + $0x68] sm:$0xff]
  %v28 = vld [vmem:[%s0 + $0x70] sm:$0xff]
  %v29 = vld [vmem:[%s0 + $0x78] sm:$0xff]
  %v30 = vld [vmem:[%s1] sm:$0x3]
  %v32 = vlaneseq
  %v33 = vshrl.u32 %v32, 7
  %v34 = vsub.s32 0, %v33
  %v35 = vrot.slane %v30, %v34
  %v36 = vlaneseq
  %v37 = vshrl.u32 %v36, 7
  %v38 = vsub.s32 1, %v37
  %v39 = vrot.slane %v30, %v38
  %v42 = vmul.f32 %v14, %v35
  %v43 = vmul.f32 %v15, %v39
  %v44 = vmul.f32 %v16, %v35
  %v45 = vmul.f32 %v17, %v39
  %v46 = vmul.f32 %v18, %v35
  %v47 = vmul.f32 %v19, %v39
  %v48 = vmul.f32 %v20, %v35
  %v49 = vmul.f32 %v21, %v39
  %v50 = vmul.f32 %v22, %v35
  %v51 = vmul.f32 %v23, %v39
  %v52 = vmul.f32 %v24, %v35
  %v53 = vmul.f32 %v25, %v39
  %v54 = vmul.f32 %v26, %v35
  %v55 = vmul.f32 %v27, %v39
  %v56 = vmul.f32 %v28, %v35
  %v57 = vmul.f32 %v29, %v39
  %v58 = vld [vmem:[%s2] sm:$0x3]
  %v60 = vlaneseq
  %v61 = vshrl.u32 %v60, 7
  %v62 = vsub.s32 0, %v61
  %v63 = vrot.slane %v58, %v62
  %v64 = vlaneseq
  %v65 = vshrl.u32 %v64, 7
  %v66 = vsub.s32 1, %v65
  %v67 = vrot.slane %v58, %v66
  %v70 = vadd.f32 %v42, %v63
  %v71 = vadd.f32 %v43, %v67
  %v72 = vadd.f32 %v44, %v63
  %v73 = vadd.f32 %v45, %v67
  %v74 = vadd.f32 %v46, %v63
  %v75 = vadd.f32 %v47, %v67
  %v76 = vadd.f32 %v48, %v63
  %v77 = vadd.f32 %v49, %v67
  %v78 = vadd.f32 %v50, %v63
  %v79 = vadd.f32 %v51, %v67
  %v80 = vadd.f32 %v52, %v63
  %v81 = vadd.f32 %v53, %v67
  %v82 = vadd.f32 %v54, %v63
  %v83 = vadd.f32 %v55, %v67
  %v84 = vadd.f32 %v56, %v63
  %v85 = vadd.f32 %v57, %v67
  %v86 = vmax.f32 %v70, 0.0
  %v87 = vmax.f32 %v71, 0.0
  %v88 = vmax.f32 %v72, 0.0
  %v89 = vmax.f32 %v73, 0.0
  %v90 = vmax.f32 %v74, 0.0
  %v91 = vmax.f32 %v75, 0.0
  %v92 = vmax.f32 %v76, 0.0
  %v93 = vmax.f32 %v77, 0.0
  %v94 = vmax.f32 %v78, 0.0
  %v95 = vmax.f32 %v79, 0.0
  %v96 = vmax.f32 %v80, 0.0
  %v97 = vmax.f32 %v81, 0.0
  %v98 = vmax.f32 %v82, 0.0
  %v99 = vmax.f32 %v83, 0.0
  %v100 = vmax.f32 %v84, 0.0
  %v101 = vmax.f32 %v85, 0.0
  %v102 = vpack.c.bf16 %v88, %v86
  %v103 = vpack.c.bf16 %v89, %v87
  %v104 = vpack.c.bf16 %v92, %v90
  %v105 = vpack.c.bf16 %v93, %v91
  %v106 = vpack.c.bf16 %v96, %v94
  %v107 = vpack.c.bf16 %v97, %v95
  %v108 = vpack.c.bf16 %v100, %v98
  %v109 = vpack.c.bf16 %v101, %v99
  %v118 = vunpack.c.l.b16 %v102
  %v119 = vunpack.c.l.b16 %v103
  %v120 = vunpack.c.h.b16 %v102
  %v121 = vunpack.c.h.b16 %v103
  %v122 = vunpack.c.l.b16 %v104
  %v123 = vunpack.c.l.b16 %v105
  %v124 = vunpack.c.h.b16 %v104
  %v125 = vunpack.c.h.b16 %v105
  %v126 = vunpack.c.l.b16 %v106
  %v127 = vunpack.c.l.b16 %v107
  %v128 = vunpack.c.h.b16 %v106
  %v129 = vunpack.c.h.b16 %v107
  %v130 = vunpack.c.l.b16 %v108
  %v131 = vunpack.c.l.b16 %v109
  %v132 = vunpack.c.h.b16 %v108
  %v133 = vunpack.c.h.b16 %v109
  %v134 = vpack.c.b16 %v119, %v118
  %v135 = vpack.c.b16 %v121, %v120
  %v136 = vpack.c.b16 %v123, %v122
  %v137 = vpack.c.b16 %v125, %v124
  %v138 = vpack.c.b16 %v127, %v126
  %v139 = vpack.c.b16 %v129, %v128
  %v140 = vpack.c.b16 %v131, %v130
  %v141 = vpack.c.b16 %v133, %v132
  %150 = vst [vmem:[%s3] sm:$0xff] %v134
  %151 = vst [vmem:[%s3 + $0x8] sm:$0xff] %v135
  %152 = vst [vmem:[%s3 + $0x10] sm:$0xff] %v136
  %153 = vst [vmem:[%s3 + $0x18] sm:$0xff] %v137
  %154 = vst [vmem:[%s3 + $0x20] sm:$0xff] %v138
  %155 = vst [vmem:[%s3 + $0x28] sm:$0xff] %v139
  %156 = vst [vmem:[%s3 + $0x30] sm:$0xff] %v140
  %157 = vst [vmem:[%s3 + $0x38] sm:$0xff] %v141
  // Predicated region
  $region14: #{dec_forward.8} parent=0 // pred_check
    _
  $region15: #{dec_forward.8} parent=0 // pred_check_branch
    %159 = sbr.rel (0) target = $region17
  $region16: #{dec_forward.8} parent=0 // pred_region
    _
  $region17: #{dec_forward.8} parent=0 // pred_fallthru
    _
  // Predicated region
  $region18: #{dec_forward.8} parent=0 // pred_check
    _
  $region19: #{dec_forward.8} parent=0 // pred_check_branch
    %161 = sbr.rel (0) target = $region21
  $region20: #{dec_forward.8} parent=0 // pred_region
    _
  $region21: #{dec_forward.8} parent=0 // pred_fallthru
    _

// kernel: dec_forward.9
$region0: #{dec_forward.9}
  #allocation0 [shape = 'u32[]', space=smem, size = 0x4, offset = 0x4, fixed_abs, tag = 'smem constant byte address 0x4 - core index']
  #allocation1 [shape = 'u32[144,128]{1,0:T(1,128)}', space=vmem, size = 0x12000, scoped, tag = 'internal scratch']
  %s0 = inlined_call_operand.vmem [shape: bf16[2560,32], index: 0, kind: input, shape index: {}]
  %s1 = inlined_call_operand.vmem [shape: bf16[32,12], index: 1, kind: input, shape index: {}]
  %s2 = inlined_call_operand.vmem [shape: f32[2560,12], index: 2, kind: output, shape index: {}]
  %s3 = sld [smem:[#allocation0]]
  $region41: #{dec_forward.9} parent=0
    _
  %s5 = ssub.s32 1, %s3
  %s6 = scalar_select 0, %s5, %s3
  loop: start=0, step=1, limit=7
  $region2: #{dec_forward.9} parent=0 // loop_pre_header
    _
  $region3: #{dec_forward.9} parent=0 // loop_header
    %s8 = sphi 0, %s12
    %p9 = scmp.ge.s32.totalorder %s8, 7
    %s18 = sphi 0, %s20
    %s21 = sphi 0, %s18
    %s22 = sphi 0, %s21
    %s38 = sphi 0, %s22
    %s42 = sphi 0, %s42
    %s44 = sphi 0, %s42
    %s45 = sphi 0, %s44
    %s59 = sphi 0, %s45
    %s65 = sphi 0, %s67
    %s68 = sphi 0, %s65
    %s69 = sphi 0, %s68
    %s85 = sphi 0, %s69
  $region4: #{dec_forward.9} parent=0 // loop_header_branch
    %11 = sbr.rel (%p9) target = $region8
  $region5: #{dec_forward.9} parent=0 // loop_body
    %s13 = ssub.s32 %s8, 1
    %s14 = ssub.s32 %s8, 2
    %s15 = sadd.s32 %s8, 1
    %s16 = ssub.s32 %s8, %s15
    %p17 = scmp.eq.s32.totalorder %s16, 0
    %s19 = sadd.s32 %s18, 1
    %s20 = scalar_select %p17, %s18, %s19
    %p23 = pneg %p17
    %p24 = scmp.eq.s32.totalorder %s8, 4
    %p25 = por %p23, %p24
    %p26 = scmp.ne.s32.totalorder %s18, %s21
    %p27 = scmp.eq.s32.totalorder %s8, 0
    %p28 = por %p26, %p27
    %p29 = scmp.ne.s32.totalorder %s18, %s21
    %p30 = scmp.eq.s32.totalorder %s13, 4
    %p31 = por %p29, %p30
    %p32 = scmp.ne.s32.totalorder %s21, %s22
    %p33 = scmp.eq.s32.totalorder %s13, 0
    %p34 = por %p32, %p33
    %p35 = scmp.ne.s32.totalorder %s21, %s22
    %p36 = scmp.eq.s32.totalorder %s14, 4
    %p37 = por %p35, %p36
    %p39 = scmp.ne.s32.totalorder %s22, %s38
    %p40 = scmp.eq.s32.totalorder %s14, 0
    %p41 = por %p39, %p40
    %s43 = sadd.s32 %s42, 1
    %p46 = scmp.eq.s32.totalorder %s8, 4
    %p47 = scmp.ne.s32.totalorder %s42, %s44
    %p48 = scmp.eq.s32.totalorder %s8, 0
    %p49 = por %p47, %p48
    %p50 = scmp.ne.s32.totalorder %s42, %s44
    %p51 = scmp.eq.s32.totalorder %s13, 4
    %p52 = por %p50, %p51
    %p53 = scmp.ne.s32.totalorder %s44, %s45
    %p54 = scmp.eq.s32.totalorder %s13, 0
    %p55 = por %p53, %p54
    %p56 = scmp.ne.s32.totalorder %s44, %s45
    %p57 = scmp.eq.s32.totalorder %s14, 4
    %p58 = por %p56, %p57
    %p60 = scmp.ne.s32.totalorder %s45, %s59
    %p61 = scmp.eq.s32.totalorder %s14, 0
    %p62 = por %p60, %p61
    %s63 = ssub.s32 %s8, %s15
    %p64 = scmp.eq.s32.totalorder %s63, 0
    %s66 = sadd.s32 %s65, 1
    %s67 = scalar_select %p64, %s65, %s66
    %p70 = pneg %p64
    %p71 = scmp.eq.s32.totalorder %s8, 4
    %p72 = por %p70, %p71
    %p73 = scmp.ne.s32.totalorder %s65, %s68
    %p74 = scmp.eq.s32.totalorder %s8, 0
    %p75 = por %p73, %p74
    %p76 = scmp.ne.s32.totalorder %s65, %s68
    %p77 = scmp.eq.s32.totalorder %s13, 4
    %p78 = por %p76, %p77
    %p79 = scmp.ne.s32.totalorder %s68, %s69
    %p80 = scmp.eq.s32.totalorder %s13, 0
    %p81 = por %p79, %p80
    %p82 = scmp.ne.s32.totalorder %s68, %s69
    %p83 = scmp.eq.s32.totalorder %s14, 4
    %p84 = por %p82, %p83
    %p86 = scmp.ne.s32.totalorder %s69, %s85
    %p87 = scmp.eq.s32.totalorder %s14, 0
    %p88 = por %p86, %p87
    %p89 = scmp.le.s32.totalorder 1, %s8
    %p90 = scmp.lt.s32.totalorder %s8, 6
    %p91 = pnand %p89, %p90
    %p92 = pneg %p91
    // Predicated region
    $region9: #{dec_forward.9} parent=5 // pred_check
      _
    $region10: #{dec_forward.9} parent=5 // pred_check_branch
      %94 = sbr.rel (%p91) target = $region12
    $region11: #{dec_forward.9} parent=5 // pred_region
      %s95 = ssub.s32 %s8, 1
      // Predicated region
      $region13: #{dec_forward.9} parent=11 // pred_check
        %p96 = pneg %p55
      $region14: #{dec_forward.9} parent=11 // pred_check_branch
        %98 = sbr.rel (%p96) target = $region16
      $region15: #{dec_forward.9} parent=11 // pred_region
        _
      $region16: #{dec_forward.9} parent=11 // pred_fallthru
        _
    $region12: #{dec_forward.9} parent=5 // pred_fallthru
      _
    %p99 = scmp.lt.s32.totalorder %s8, 5
    // Predicated region
    $region17: #{dec_forward.9} parent=5 // pred_check
      %p100 = pneg %p99
    $region18: #{dec_forward.9} parent=5 // pred_check_branch
      %102 = sbr.rel (%p100) target = $region20
    $region19: #{dec_forward.9} parent=5 // pred_region
      // Predicated region
      $region21: #{dec_forward.9} parent=19 // pred_check
        %p103 = pneg %p28
      $region22: #{dec_forward.9} parent=19 // pred_check_branch
        %105 = sbr.rel (%p103) target = $region24
      $region23: #{dec_forward.9} parent=19 // pred_region
        %s106 = smul.u32 64, %s8
        %p107 = scmp.lt.s32.totalorder %s106, 319
        %s108 = scalar_select %p107, %s106, 319
        %s109 = smul.addr %s108, 4
        %s110 = scalar_lea.vmem %s0, %s109
        %s111 = smul.u32 64, %s8
      $region24: #{dec_forward.9} parent=19 // pred_fallthru
        _
    $region20: #{dec_forward.9} parent=5 // pred_fallthru
      _
    %p112 = scmp.le.s32.totalorder 1, %s8
    %p113 = scmp.lt.s32.totalorder %s8, 6
    %p114 = pnand %p112, %p113
    %p115 = pneg %p114
    // Predicated region
    $region25: #{dec_forward.9} parent=5 // pred_check
      _
    $region26: #{dec_forward.9} parent=5 // pred_check_branch
      %117 = sbr.rel (%p114) target = $region28
    $region27: #{dec_forward.9} parent=5 // pred_region
      %s118 = ssub.s32 %s8, 1
      %s119 = smul.u32 64, %s13
      %p120 = scmp.lt.s32.totalorder %s119, 319
      %s121 = scalar_select %p120, %s119, 319
      %s122 = smul.addr %s121, 4
      %s123 = scalar_lea.vmem %s0, %s122
      %p124 = pneg %p34
      %p125 = pneg %p31
      %p126 = pneg %p55
      %p127 = pneg %p52
      %p128 = pneg %p81
      %p129 = pneg %p78
      %s130 = smul.u32 64, %s13
      %p131 = scmp.lt.s32.totalorder %s130, 319
      %s132 = scalar_select %p131, %s130, 319
      %s133 = smul.addr %s132, 8
      %s134 = scalar_lea.vmem %s2, %s133
      %s135 = smul.u32 64, %s13
      %p136 = scmp.lt.s32.totalorder %s135, 319
      %s137 = scalar_select %p136, %s135, 319
      %s138 = smul.addr %s137, 4
      %s139 = scalar_lea.vmem %s0, %s138
      %s140 = smul.u32 64, %s13
      %s141 = smul.u32 64, %s13
      %p142 = scmp.lt.s32.totalorder %s141, 319
      %s143 = scalar_select %p142, %s141, 319
      %s144 = smul.addr %s143, 8
      %s145 = scalar_lea.vmem %s2, %s144
      %s146 = smul.u32 64, %s13
      %v148 = vld [vmem:[%s139] sm:$0xf]
      %v149 = vld [vmem:[%s139 + $0x4] sm:$0xf]
      %v150 = vld [vmem:[%s139 + $0x8] sm:$0xf]
      %v151 = vld [vmem:[%s139 + $0xc] sm:$0xf]
      %v152 = vld [vmem:[%s139 + $0x10] sm:$0xf]
      %v153 = vld [vmem:[%s139 + $0x14] sm:$0xf]
      %v154 = vld [vmem:[%s139 + $0x18] sm:$0xf]
      %v155 = vld [vmem:[%s139 + $0x1c] sm:$0xf]
      %v156 = vld [vmem:[%s139 + $0x20] sm:$0xf]
      %v157 = vld [vmem:[%s139 + $0x24] sm:$0xf]
      %v158 = vld [vmem:[%s139 + $0x28] sm:$0xf]
      %v159 = vld [vmem:[%s139 + $0x2c] sm:$0xf]
      %v160 = vld [vmem:[%s139 + $0x30] sm:$0xf]
      %v161 = vld [vmem:[%s139 + $0x34] sm:$0xf]
      %v162 = vld [vmem:[%s139 + $0x38] sm:$0xf]
      %v163 = vld [vmem:[%s139 + $0x3c] sm:$0xf]
      %v164 = vld [vmem:[%s139 + $0x40] sm:$0xf]
      %v165 = vld [vmem:[%s139 + $0x44] sm:$0xf]
      %v166 = vld [vmem:[%s139 + $0x48] sm:$0xf]
      %v167 = vld [vmem:[%s139 + $0x4c] sm:$0xf]
      %v168 = vld [vmem:[%s139 + $0x50] sm:$0xf]
      %v169 = vld [vmem:[%s139 + $0x54] sm:$0xf]
      %v170 = vld [vmem:[%s139 + $0x58] sm:$0xf]
      %v171 = vld [vmem:[%s139 + $0x5c] sm:$0xf]
      %v172 = vld [vmem:[%s139 + $0x60] sm:$0xf]
      %v173 = vld [vmem:[%s139 + $0x64] sm:$0xf]
      %v174 = vld [vmem:[%s139 + $0x68] sm:$0xf]
      %v175 = vld [vmem:[%s139 + $0x6c] sm:$0xf]
      %v176 = vld [vmem:[%s139 + $0x70] sm:$0xf]
      %v177 = vld [vmem:[%s139 + $0x74] sm:$0xf]
      %v178 = vld [vmem:[%s139 + $0x78] sm:$0xf]
      %v179 = vld [vmem:[%s139 + $0x7c] sm:$0xf]
      %v180 = vld [vmem:[%s139 + $0x80] sm:$0xf]
      %v181 = vld [vmem:[%s139 + $0x84] sm:$0xf]
      %v182 = vld [vmem:[%s139 + $0x88] sm:$0xf]
      %v183 = vld [vmem:[%s139 + $0x8c] sm:$0xf]
      %v184 = vld [vmem:[%s139 + $0x90] sm:$0xf]
      %v185 = vld [vmem:[%s139 + $0x94] sm:$0xf]
      %v186 = vld [vmem:[%s139 + $0x98] sm:$0xf]
      %v187 = vld [vmem:[%s139 + $0x9c] sm:$0xf]
      %v188 = vld [vmem:[%s139 + $0xa0] sm:$0xf]
      %v189 = vld [vmem:[%s139 + $0xa4] sm:$0xf]
      %v190 = vld [vmem:[%s139 + $0xa8] sm:$0xf]
      %v191 = vld [vmem:[%s139 + $0xac] sm:$0xf]
      %v192 = vld [vmem:[%s139 + $0xb0] sm:$0xf]
      %v193 = vld [vmem:[%s139 + $0xb4] sm:$0xf]
      %v194 = vld [vmem:[%s139 + $0xb8] sm:$0xf]
      %v195 = vld [vmem:[%s139 + $0xbc] sm:$0xf]
      %v196 = vld [vmem:[%s139 + $0xc0] sm:$0xf]
      %v197 = vld [vmem:[%s139 + $0xc4] sm:$0xf]
      %v198 = vld [vmem:[%s139 + $0xc8] sm:$0xf]
      %v199 = vld [vmem:[%s139 + $0xcc] sm:$0xf]
      %v200 = vld [vmem:[%s139 + $0xd0] sm:$0xf]
      %v201 = vld [vmem:[%s139 + $0xd4] sm:$0xf]
      %v202 = vld [vmem:[%s139 + $0xd8] sm:$0xf]
      %v203 = vld [vmem:[%s139 + $0xdc] sm:$0xf]
      %v204 = vld [vmem:[%s139 + $0xe0] sm:$0xf]
      %v205 = vld [vmem:[%s139 + $0xe4] sm:$0xf]
      %v206 = vld [vmem:[%s139 + $0xe8] sm:$0xf]
      %v207 = vld [vmem:[%s139 + $0xec] sm:$0xf]
      %v208 = vld [vmem:[%s139 + $0xf0] sm:$0xf]
      %v209 = vld [vmem:[%s139 + $0xf4] sm:$0xf]
      %v210 = vld [vmem:[%s139 + $0xf8] sm:$0xf]
      %v211 = vld [vmem:[%s139 + $0xfc] sm:$0xf]
      %v212 = vld [vmem:[%s1] sm:$0xf]
      %v213 = vld [vmem:[%s1 + $0x4] sm:$0xf]
      %v214 = vld [vmem:[%s1 + $0x8] sm:$0xf]
      %v215 = vld [vmem:[%s1 + $0xc] sm:$0xf]
      %v280 = vunpack.c.l.b16 %v148
      %v281 = vunpack.c.l.b16 %v149
      %v282 = vunpack.c.l.b16 %v150
      %v283 = vunpack.c.l.b16 %v151
      %v284 = vunpack.c.l.b16 %v152
      %v285 = vunpack.c.l.b16 %v153
      %v286 = vunpack.c.l.b16 %v154
      %v287 = vunpack.c.l.b16 %v155
      %v288 = vunpack.c.l.b16 %v156
      %v289 = vunpack.c.l.b16 %v157
      %v290 = vunpack.c.l.b16 %v158
      %v291 = vunpack.c.l.b16 %v159
      %v292 = vunpack.c.l.b16 %v160
      %v293 = vunpack.c.l.b16 %v161
      %v294 = vunpack.c.l.b16 %v162
      %v295 = vunpack.c.l.b16 %v163
      %v296 = vunpack.c.l.b16 %v164
      %v297 = vunpack.c.l.b16 %v165
      %v298 = vunpack.c.l.b16 %v166
      %v299 = vunpack.c.l.b16 %v167
      %v300 = vunpack.c.l.b16 %v168
      %v301 = vunpack.c.l.b16 %v169
      %v302 = vunpack.c.l.b16 %v170
      %v303 = vunpack.c.l.b16 %v171
      %v304 = vunpack.c.l.b16 %v172
      %v305 = vunpack.c.l.b16 %v173
      %v306 = vunpack.c.l.b16 %v174
      %v307 = vunpack.c.l.b16 %v175
      %v308 = vunpack.c.l.b16 %v176
      %v309 = vunpack.c.l.b16 %v177
      %v310 = vunpack.c.l.b16 %v178
      %v311 = vunpack.c.l.b16 %v179
      %v312 = vunpack.c.l.b16 %v180
      %v313 = vunpack.c.l.b16 %v181
      %v314 = vunpack.c.l.b16 %v182
      %v315 = vunpack.c.l.b16 %v183
      %v316 = vunpack.c.l.b16 %v184
      %v317 = vunpack.c.l.b16 %v185
      %v318 = vunpack.c.l.b16 %v186
      %v319 = vunpack.c.l.b16 %v187
      %v320 = vunpack.c.l.b16 %v188
      %v321 = vunpack.c.l.b16 %v189
      %v322 = vunpack.c.l.b16 %v190
      %v323 = vunpack.c.l.b16 %v191
      %v324 = vunpack.c.l.b16 %v192
      %v325 = vunpack.c.l.b16 %v193
      %v326 = vunpack.c.l.b16 %v194
      %v327 = vunpack.c.l.b16 %v195
      %v328 = vunpack.c.l.b16 %v196
      %v329 = vunpack.c.l.b16 %v197
      %v330 = vunpack.c.l.b16 %v198
      %v331 = vunpack.c.l.b16 %v199
      %v332 = vunpack.c.l.b16 %v200
      %v333 = vunpack.c.l.b16 %v201
      %v334 = vunpack.c.l.b16 %v202
      %v335 = vunpack.c.l.b16 %v203
      %v336 = vunpack.c.l.b16 %v204
      %v337 = vunpack.c.l.b16 %v205
      %v338 = vunpack.c.l.b16 %v206
      %v339 = vunpack.c.l.b16 %v207
      %v340 = vunpack.c.l.b16 %v208
      %v341 = vunpack.c.l.b16 %v209
      %v342 = vunpack.c.l.b16 %v210
      %v343 = vunpack.c.l.b16 %v211
      %v344 = vpack.c.b16 %v281, %v280
      %v345 = vpack.c.b16 %v283, %v282
      %v346 = vpack.c.b16 %v285, %v284
      %v347 = vpack.c.b16 %v287, %v286
      %v348 = vpack.c.b16 %v289, %v288
      %v349 = vpack.c.b16 %v291, %v290
      %v350 = vpack.c.b16 %v293, %v292
      %v351 = vpack.c.b16 %v295, %v294
      %v352 = vpack.c.b16 %v297, %v296
      %v353 = vpack.c.b16 %v299, %v298
      %v354 = vpack.c.b16 %v301, %v300
      %v355 = vpack.c.b16 %v303, %v302
      %v356 = vpack.c.b16 %v305, %v304
      %v357 = vpack.c.b16 %v307, %v306
      %v358 = vpack.c.b16 %v309, %v308
      %v359 = vpack.c.b16 %v311, %v310
      %v360 = vpack.c.b16 %v313, %v312
      %v361 = vpack.c.b16 %v315, %v314
      %v362 = vpack.c.b16 %v317, %v316
      %v363 = vpack.c.b16 %v319, %v318
      %v364 = vpack.c.b16 %v321, %v320
      %v365 = vpack.c.b16 %v323, %v322
      %v366 = vpack.c.b16 %v325, %v324
      %v367 = vpack.c.b16 %v327, %v326
      %v368 = vpack.c.b16 %v329, %v328
      %v369 = vpack.c.b16 %v331, %v330
      %v370 = vpack.c.b16 %v333, %v332
      %v371 = vpack.c.b16 %v335, %v334
      %v372 = vpack.c.b16 %v337, %v336
      %v373 = vpack.c.b16 %v339, %v338
      %v374 = vpack.c.b16 %v341, %v340
      %v375 = vpack.c.b16 %v343, %v342
      %v380 = vunpack.c.l.b16 %v212
      %v381 = vunpack.c.l.b16 %v213
      %v382 = vunpack.c.l.b16 %v214
      %v383 = vunpack.c.l.b16 %v215
      %v384 = vpack.c.b16 %v381, %v380
      %v385 = vpack.c.b16 %v383, %v382
      %vm388 = vcmask 261120
      %v390 = vsel %vm388, %v344, 0
      %v393 = vsel %vm388, %v345, 0
      %v396 = vsel %vm388, %v346, 0
      %v399 = vsel %vm388, %v347, 0
      %v402 = vsel %vm388, %v348, 0
      %v405 = vsel %vm388, %v349, 0
      %v408 = vsel %vm388, %v350, 0
      %v411 = vsel %vm388, %v351, 0
      %v414 = vsel %vm388, %v352, 0
      %v417 = vsel %vm388, %v353, 0
      %v420 = vsel %vm388, %v354, 0
      %v423 = vsel %vm388, %v355, 0
      %v426 = vsel %vm388, %v356, 0
      %v429 = vsel %vm388, %v357, 0
      %v432 = vsel %vm388, %v358, 0
      %v435 = vsel %vm388, %v359, 0
      %v438 = vsel %vm388, %v360, 0
      %v441 = vsel %vm388, %v361, 0
      %v444 = vsel %vm388, %v362, 0
      %v447 = vsel %vm388, %v363, 0
      %v450 = vsel %vm388, %v364, 0
      %v453 = vsel %vm388, %v365, 0
      %v456 = vsel %vm388, %v366, 0
      %v459 = vsel %vm388, %v367, 0
      %v462 = vsel %vm388, %v368, 0
      %v465 = vsel %vm388, %v369, 0
      %v468 = vsel %vm388, %v370, 0
      %v471 = vsel %vm388, %v371, 0
      %v474 = vsel %vm388, %v372, 0
      %v477 = vsel %vm388, %v373, 0
      %v480 = vsel %vm388, %v374, 0
      %v483 = vsel %vm388, %v375, 0
      %485 = vmatprep.subr.bf16.mxu0 0
      %486 = vmatpush1.bf16.msra.mxu0 %v384
      %487 = vmatprep.subr.bf16.mxu0 0
      %488 = vmatpush1.bf16.msra.mxu0 %v385
      %489 = vmatprep.subr.bf16.mxu0 0
      %490 = vmatpush1.bf16.msra.mxu0 0
      %491 = vmatprep.subr.bf16.mxu0 0
      %492 = vmatpush1.bf16.msra.mxu0 0
      %493 = vmatprep.subr.bf16.mxu0 0
      %494 = vmatpush1.bf16.msra.mxu0 0
      %495 = vmatprep.subr.bf16.mxu0 0
      %496 = vmatpush1.bf16.msra.mxu0 0
      %497 = vmatprep.subr.bf16.mxu0 0
      %498 = vmatpush1.bf16.msra.mxu0 0
      %499 = vmatprep.subr.bf16.mxu0 0
      %500 = vmatpush1.bf16.msra.mxu0 0
      %501 = vmatprep.subr.bf16.mxu0 0
      %502 = vmatpush1.bf16.msra.mxu0 0
      %503 = vmatprep.subr.bf16.mxu0 0
      %504 = vmatpush1.bf16.msra.mxu0 0
      %505 = vmatprep.subr.bf16.mxu0 0
      %506 = vmatpush1.bf16.msra.mxu0 0
      %507 = vmatprep.subr.bf16.mxu0 0
      %508 = vmatpush1.bf16.msra.mxu0 0
      %509 = vmatprep.subr.bf16.mxu0 0
      %510 = vmatpush1.bf16.msra.mxu0 0
      %511 = vmatprep.subr.bf16.mxu0 0
      %512 = vmatpush1.bf16.msra.mxu0 0
      %513 = vmatprep.subr.bf16.mxu0 0
      %514 = vmatpush1.bf16.msra.mxu0 0
      %515 = vmatprep.subr.bf16.mxu0 0
      %516 = vmatpush1.bf16.msra.mxu0 0
      %517 = vmatprep.mubr.bf16.mxu0 0
      %518 = vmatmul.mubr.bf16.gmra.mrb[0].mxu0 %v390
      %v519 = vpop.f32.mrb[0].mxu0
      %v520 = vadd.f32 0.0, %v519
      %v521 = vpop.f32.mrb[0].mxu0
      %v522 = vpop.f32.mrb[0].mxu0
      %v523 = vadd.f32 0.0, %v522
      %v524 = vpop.f32.mrb[0].mxu0
      %525 = vmatprep.mubr.bf16.mxu0 0
      %526 = vmatmul.mubr.bf16.gmra.mrb[0].mxu0 %v393
      %v527 = vpop.f32.mrb[0].mxu0
      %v528 = vadd.f32 0.0, %v527
      %v529 = vpop.f32.mrb[0].mxu0
      %v530 = vpop.f32.mrb[0].mxu0
      %v531 = vadd.f32 0.0, %v530
      %v532 = vpop.f32.mrb[0].mxu0
      %533 = vmatprep.mubr.bf16.mxu0 0
      %534 = vmatmul.mubr.bf16.gmra.mrb[0].mxu0 %v396
      %v535 = vpop.f32.mrb[0].mxu0
      %v536 = vadd.f32 0.0, %v535
      %v537 = vpop.f32.mrb[0].mxu0
      %v538 = vpop.f32.mrb[0].mxu0
      %v539 = vadd.f32 0.0, %v538
      %v540 = vpop.f32.mrb[0].mxu0
      %541 = vmatprep.mubr.bf16.mxu0 0
      %542 = vmatmul.mubr.bf16.gmra.mrb[0].mxu0 %v399
      %v543 = vpop.f32.mrb[0].mxu0
      %v544 = vadd.f32 0.0, %v543
      %v545 = vpop.f32.mrb[0].mxu0
      %v546 = vpop.f32.mrb[0].mxu0
      %v547 = vadd.f32 0.0, %v546
      %v548 = vpop.f32.mrb[0].mxu0
      %549 = vmatprep.mubr.bf16.mxu0 0
      %550 = vmatmul.mubr.bf16.gmra.mrb[0].mxu0 %v402
      %v551 = vpop.f32.mrb[0].mxu0
      %v552 = vadd.f32 0.0, %v551
      %v553 = vpop.f32.mrb[0].mxu0
      %v554 = vpop.f32.mrb[0].mxu0
      %v555 = vadd.f32 0.0, %v554
      %v556 = vpop.f32.mrb[0].mxu0
      %557 = vmatprep.mubr.bf16.mxu0 0
      %558 = vmatmul.mubr.bf16.gmra.mrb[0].mxu0 %v405
      %v559 = vpop.f32.mrb[0].mxu0
      %v560 = vadd.f32 0.0, %v559
      %v561 = vpop.f32.mrb[0].mxu0
      %v562 = vpop.f32.mrb[0].mxu0
      %v563 = vadd.f32 0.0, %v562
      %v564 = vpop.f32.mrb[0].mxu0
      %565 = vmatprep.mubr.bf16.mxu0 0
      %566 = vmatmul.mubr.bf16.gmra.mrb[0].mxu0 %v408
      %v567 = vpop.f32.mrb[0].mxu0
      %v568 = vadd.f32 0.0, %v567
      %v569 = vpop.f32.mrb[0].mxu0
      %v570 = vpop.f32.mrb[0].mxu0
      %v571 = vadd.f32 0.0, %v570
      %v572 = vpop.f32.mrb[0].mxu0
      %573 = vmatprep.mubr.bf16.mxu0 0
      %574 = vmatmul.mubr.bf16.gmra.mrb[0].mxu0 %v411
      %v575 = vpop.f32.mrb[0].mxu0
      %v576 = vadd.f32 0.0, %v575
      %v577 = vpop.f32.mrb[0].mxu0
      %v578 = vpop.f32.mrb[0].mxu0
      %v579 = vadd.f32 0.0, %v578
      %v580 = vpop.f32.mrb[0].mxu0
      %581 = vmatprep.mubr.bf16.mxu0 0
      %582 = vmatmul.mubr.bf16.gmra.mrb[0].mxu0 %v414
      %v583 = vpop.f32.mrb[0].mxu0
      %v584 = vadd.f32 0.0, %v583
      %v585 = vpop.f32.mrb[0].mxu0
      %v586 = vpop.f32.mrb[0].mxu0
      %v587 = vadd.f32 0.0, %v586
      %v588 = vpop.f32.mrb[0].mxu0
      %589 = vmatprep.mubr.bf16.mxu0 0
      %590 = vmatmul.mubr.bf16.gmra.mrb[0].mxu0 %v417
      %v591 = vpop.f32.mrb[0].mxu0
      %v592 = vadd.f32 0.0, %v591
      %v593 = vpop.f32.mrb[0].mxu0
      %v594 = vpop.f32.mrb[0].mxu0
      %v595 = vadd.f32 0.0, %v594
      %v596 = vpop.f32.mrb[0].mxu0
      %597 = vmatprep.mubr.bf16.mxu0 0
      %598 = vmatmul.mubr.bf16.gmra.mrb[0].mxu0 %v420
      %v599 = vpop.f32.mrb[0].mxu0
      %v600 = vadd.f32 0.0, %v599
      %v601 = vpop.f32.mrb[0].mxu0
      %v602 = vpop.f32.mrb[0].mxu0
      %v603 = vadd.f32 0.0, %v602
      %v604 = vpop.f32.mrb[0].mxu0
      %605 = vmatprep.mubr.bf16.mxu0 0
      %606 = vmatmul.mubr.bf16.gmra.mrb[0].mxu0 %v423
      %v607 = vpop.f32.mrb[0].mxu0
      %v608 = vadd.f32 0.0, %v607
      %v609 = vpop.f32.mrb[0].mxu0
      %v610 = vpop.f32.mrb[0].mxu0
      %v611 = vadd.f32 0.0, %v610
      %v612 = vpop.f32.mrb[0].mxu0
      %613 = vmatprep.mubr.bf16.mxu0 0
      %614 = vmatmul.mubr.bf16.gmra.mrb[0].mxu0 %v426
      %v615 = vpop.f32.mrb[0].mxu0
      %v616 = vadd.f32 0.0, %v615
      %v617 = vpop.f32.mrb[0].mxu0
      %v618 = vpop.f32.mrb[0].mxu0
      %v619 = vadd.f32 0.0, %v618
      %v620 = vpop.f32.mrb[0].mxu0
      %621 = vmatprep.mubr.bf16.mxu0 0
      %622 = vmatmul.mubr.bf16.gmra.mrb[0].mxu0 %v429
      %v623 = vpop.f32.mrb[0].mxu0
      %v624 = vadd.f32 0.0, %v623
      %v625 = vpop.f32.mrb[0].mxu0
      %v626 = vpop.f32.mrb[0].mxu0
      %v627 = vadd.f32 0.0, %v626
      %v628 = vpop.f32.mrb[0].mxu0
      %629 = vmatprep.mubr.bf16.mxu0 0
      %630 = vmatmul.mubr.bf16.gmra.mrb[0].mxu0 %v432
      %v631 = vpop.f32.mrb[0].mxu0
      %v632 = vadd.f32 0.0, %v631
      %v633 = vpop.f32.mrb[0].mxu0
      %v634 = vpop.f32.mrb[0].mxu0
      %v635 = vadd.f32 0.0, %v634
      %v636 = vpop.f32.mrb[0].mxu0
      %637 = vmatprep.mubr.bf16.mxu0 0
      %638 = vmatmul.mubr.bf16.gmra.mrb[0].mxu0 %v435
      %v639 = vpop.f32.mrb[0].mxu0
      %v640 = vadd.f32 0.0, %v639
      %v641 = vpop.f32.mrb[0].mxu0
      %v642 = vpop.f32.mrb[0].mxu0
      %v643 = vadd.f32 0.0, %v642
      %v644 = vpop.f32.mrb[0].mxu0
      %645 = vmatprep.mubr.bf16.mxu0 0
      %646 = vmatmul.mubr.bf16.gmra.mrb[0].mxu0 %v438
      %v647 = vpop.f32.mrb[0].mxu0
      %v648 = vadd.f32 0.0, %v647
      %v649 = vpop.f32.mrb[0].mxu0
      %v650 = vpop.f32.mrb[0].mxu0
      %v651 = vadd.f32 0.0, %v650
      %v652 = vpop.f32.mrb[0].mxu0
      %653 = vmatprep.mubr.bf16.mxu0 0
      %654 = vmatmul.mubr.bf16.gmra.mrb[0].mxu0 %v441
      %v655 = vpop.f32.mrb[0].mxu0
      %v656 = vadd.f32 0.0, %v655
      %v657 = vpop.f32.mrb[0].mxu0
      %v658 = vpop.f32.mrb[0].mxu0
      %v659 = vadd.f32 0.0, %v658
      %v660 = vpop.f32.mrb[0].mxu0
      %661 = vmatprep.mubr.bf16.mxu0 0
      %662 = vmatmul.mubr.bf16.gmra.mrb[0].mxu0 %v444
      %v663 = vpop.f32.mrb[0].mxu0
      %v664 = vadd.f32 0.0, %v663
      %v665 = vpop.f32.mrb[0].mxu0
      %v666 = vpop.f32.mrb[0].mxu0
      %v667 = vadd.f32 0.0, %v666
      %v668 = vpop.f32.mrb[0].mxu0
      %669 = vmatprep.mubr.bf16.mxu0 0
      %670 = vmatmul.mubr.bf16.gmra.mrb[0].mxu0 %v447
      %v671 = vpop.f32.mrb[0].mxu0
      %v672 = vadd.f32 0.0, %v671
      %v673 = vpop.f32.mrb[0].mxu0
      %v674 = vpop.f32.mrb[0].mxu0
      %v675 = vadd.f32 0.0, %v674
      %v676 = vpop.f32.mrb[0].mxu0
      %677 = vmatprep.mubr.bf16.mxu0 0
      %678 = vmatmul.mubr.bf16.gmra.mrb[0].mxu0 %v450
      %v679 = vpop.f32.mrb[0].mxu0
      %v680 = vadd.f32 0.0, %v679
      %v681 = vpop.f32.mrb[0].mxu0
      %v682 = vpop.f32.mrb[0].mxu0
      %v683 = vadd.f32 0.0, %v682
      %v684 = vpop.f32.mrb[0].mxu0
      %685 = vmatprep.mubr.bf16.mxu0 0
      %686 = vmatmul.mubr.bf16.gmra.mrb[0].mxu0 %v453
      %v687 = vpop.f32.mrb[0].mxu0
      %v688 = vadd.f32 0.0, %v687
      %v689 = vpop.f32.mrb[0].mxu0
      %v690 = vpop.f32.mrb[0].mxu0
      %v691 = vadd.f32 0.0, %v690
      %v692 = vpop.f32.mrb[0].mxu0
      %693 = vmatprep.mubr.bf16.mxu0 0
      %694 = vmatmul.mubr.bf16.gmra.mrb[0].mxu0 %v456
      %v695 = vpop.f32.mrb[0].mxu0
      %v696 = vadd.f32 0.0, %v695
      %v697 = vpop.f32.mrb[0].mxu0
      %v698 = vpop.f32.mrb[0].mxu0
      %v699 = vadd.f32 0.0, %v698
      %v700 = vpop.f32.mrb[0].mxu0
      %701 = vmatprep.mubr.bf16.mxu0 0
      %702 = vmatmul.mubr.bf16.gmra.mrb[0].mxu0 %v459
      %v703 = vpop.f32.mrb[0].mxu0
      %v704 = vadd.f32 0.0, %v703
      %v705 = vpop.f32.mrb[0].mxu0
      %v706 = vpop.f32.mrb[0].mxu0
      %v707 = vadd.f32 0.0, %v706
      %v708 = vpop.f32.mrb[0].mxu0
      %709 = vmatprep.mubr.bf16.mxu0 0
      %710 = vmatmul.mubr.bf16.gmra.mrb[0].mxu0 %v462
      %v711 = vpop.f32.mrb[0].mxu0
      %v712 = vadd.f32 0.0, %v711
      %v713 = vpop.f32.mrb[0].mxu0
      %v714 = vpop.f32.mrb[0].mxu0
      %v715 = vadd.f32 0.0, %v714
      %v716 = vpop.f32.mrb[0].mxu0
      %717 = vmatprep.mubr.bf16.mxu0 0
      %718 = vmatmul.mubr.bf16.gmra.mrb[0].mxu0 %v465
      %v719 = vpop.f32.mrb[0].mxu0
      %v720 = vadd.f32 0.0, %v719
      %v721 = vpop.f32.mrb[0].mxu0
      %v722 = vpop.f32.mrb[0].mxu0
      %v723 = vadd.f32 0.0, %v722
      %v724 = vpop.f32.mrb[0].mxu0
      %725 = vmatprep.mubr.bf16.mxu0 0
      %726 = vmatmul.mubr.bf16.gmra.mrb[0].mxu0 %v468
      %v727 = vpop.f32.mrb[0].mxu0
      %v728 = vadd.f32 0.0, %v727
      %v729 = vpop.f32.mrb[0].mxu0
      %v730 = vpop.f32.mrb[0].mxu0
      %v731 = vadd.f32 0.0, %v730
      %v732 = vpop.f32.mrb[0].mxu0
      %733 = vmatprep.mubr.bf16.mxu0 0
      %734 = vmatmul.mubr.bf16.gmra.mrb[0].mxu0 %v471
      %v735 = vpop.f32.mrb[0].mxu0
      %v736 = vadd.f32 0.0, %v735
      %v737 = vpop.f32.mrb[0].mxu0
      %v738 = vpop.f32.mrb[0].mxu0
      %v739 = vadd.f32 0.0, %v738
      %v740 = vpop.f32.mrb[0].mxu0
      %741 = vmatprep.mubr.bf16.mxu0 0
      %742 = vmatmul.mubr.bf16.gmra.mrb[0].mxu0 %v474
      %v743 = vpop.f32.mrb[0].mxu0
      %v744 = vadd.f32 0.0, %v743
      %v745 = vpop.f32.mrb[0].mxu0
      %v746 = vpop.f32.mrb[0].mxu0
      %v747 = vadd.f32 0.0, %v746
      %v748 = vpop.f32.mrb[0].mxu0
      %749 = vmatprep.mubr.bf16.mxu0 0
      %750 = vmatmul.mubr.bf16.gmra.mrb[0].mxu0 %v477
      %v751 = vpop.f32.mrb[0].mxu0
      %v752 = vadd.f32 0.0, %v751
      %v753 = vpop.f32.mrb[0].mxu0
      %v754 = vpop.f32.mrb[0].mxu0
      %v755 = vadd.f32 0.0, %v754
      %v756 = vpop.f32.mrb[0].mxu0
      %757 = vmatprep.mubr.bf16.mxu0 0
      %758 = vmatmul.mubr.bf16.gmra.mrb[0].mxu0 %v480
      %v759 = vpop.f32.mrb[0].mxu0
      %v760 = vadd.f32 0.0, %v759
      %v761 = vpop.f32.mrb[0].mxu0
      %v762 = vpop.f32.mrb[0].mxu0
      %v763 = vadd.f32 0.0, %v762
      %v764 = vpop.f32.mrb[0].mxu0
      %765 = vmatprep.mubr.bf16.mxu0 0
      %766 = vmatmul.mubr.bf16.gmra.mrb[0].mxu0 %v483
      %v767 = vpop.f32.mrb[0].mxu0
      %v768 = vadd.f32 0.0, %v767
      %v769 = vpop.f32.mrb[0].mxu0
      %v770 = vpop.f32.mrb[0].mxu0
      %v771 = vadd.f32 0.0, %v770
      %v772 = vpop.f32.mrb[0].mxu0
      %773 = vdwg.mxu0
      %vm774 = vcmask 97280
      %775 = vst.msk [vmem:[%s145] sm:$0xff] %vm774, %v520
      %776 = vst.msk [vmem:[%s145 + $0x8] sm:$0xff] %vm774, %v523
      %777 = vst.msk [vmem:[%s145 + $0x10] sm:$0xff] %vm774, %v528
      %778 = vst.msk [vmem:[%s145 + $0x18] sm:$0xff] %vm774, %v531
      %779 = vst.msk [vmem:[%s145 + $0x20] sm:$0xff] %vm774, %v536
      %780 = vst.msk [vmem:[%s145 + $0x28] sm:$0xff] %vm774, %v539
      %781 = vst.msk [vmem:[%s145 + $0x30] sm:$0xff] %vm774, %v544
      %782 = vst.msk [vmem:[%s145 + $0x38] sm:$0xff] %vm774, %v547
      %783 = vst.msk [vmem:[%s145 + $0x40] sm:$0xff] %vm774, %v552
      %784 = vst.msk [vmem:[%s145 + $0x48] sm:$0xff] %vm774, %v555
      %785 = vst.msk [vmem:[%s145 + $0x50] sm:$0xff] %vm774, %v560
      %786 = vst.msk [vmem:[%s145 + $0x58] sm:$0xff] %vm774, %v563
      %787 = vst.msk [vmem:[%s145 + $0x60] sm:$0xff] %vm774, %v568
      %788 = vst.msk [vmem:[%s145 + $0x68] sm:$0xff] %vm774, %v571
      %789 = vst.msk [vmem:[%s145 + $0x70] sm:$0xff] %vm774, %v576
      %790 = vst.msk [vmem:[%s145 + $0x78] sm:$0xff] %vm774, %v579
      %791 = vst.msk [vmem:[%s145 + $0x80] sm:$0xff] %vm774, %v584
      %792 = vst.msk [vmem:[%s145 + $0x88] sm:$0xff] %vm774, %v587
      %793 = vst.msk [vmem:[%s145 + $0x90] sm:$0xff] %vm774, %v592
      %794 = vst.msk [vmem:[%s145 + $0x98] sm:$0xff] %vm774, %v595
      %795 = vst.msk [vmem:[%s145 + $0xa0] sm:$0xff] %vm774, %v600
      %796 = vst.msk [vmem:[%s145 + $0xa8] sm:$0xff] %vm774, %v603
      %797 = vst.msk [vmem:[%s145 + $0xb0] sm:$0xff] %vm774, %v608
      %798 = vst.msk [vmem:[%s145 + $0xb8] sm:$0xff] %vm774, %v611
      %799 = vst.msk [vmem:[%s145 + $0xc0] sm:$0xff] %vm774, %v616
      %800 = vst.msk [vmem:[%s145 + $0xc8] sm:$0xff] %vm774, %v619
      %801 = vst.msk [vmem:[%s145 + $0xd0] sm:$0xff] %vm774, %v624
      %802 = vst.msk [vmem:[%s145 + $0xd8] sm:$0xff] %vm774, %v627
      %803 = vst.msk [vmem:[%s145 + $0xe0] sm:$0xff] %vm774, %v632
      %804 = vst.msk [vmem:[%s145 + $0xe8] sm:$0xff] %vm774, %v635
      %805 = vst.msk [vmem:[%s145 + $0xf0] sm:$0xff] %vm774, %v640
      %806 = vst.msk [vmem:[%s145 + $0xf8] sm:$0xff] %vm774, %v643
      %807 = vst.msk [vmem:[%s145 + $0x100] sm:$0xff] %vm774, %v648
      %808 = vst.msk [vmem:[%s145 + $0x108] sm:$0xff] %vm774, %v651
      %809 = vst.msk [vmem:[%s145 + $0x110] sm:$0xff] %vm774, %v656
      %810 = vst.msk [vmem:[%s145 + $0x118] sm:$0xff] %vm774, %v659
      %811 = vst.msk [vmem:[%s145 + $0x120] sm:$0xff] %vm774, %v664
      %812 = vst.msk [vmem:[%s145 + $0x128] sm:$0xff] %vm774, %v667
      %813 = vst.msk [vmem:[%s145 + $0x130] sm:$0xff] %vm774, %v672
      %814 = vst.msk [vmem:[%s145 + $0x138] sm:$0xff] %vm774, %v675
      %815 = vst.msk [vmem:[%s145 + $0x140] sm:$0xff] %vm774, %v680
      %816 = vst.msk [vmem:[%s145 + $0x148] sm:$0xff] %vm774, %v683
      %817 = vst.msk [vmem:[%s145 + $0x150] sm:$0xff] %vm774, %v688
      %818 = vst.msk [vmem:[%s145 + $0x158] sm:$0xff] %vm774, %v691
      %819 = vst.msk [vmem:[%s145 + $0x160] sm:$0xff] %vm774, %v696
      %820 = vst.msk [vmem:[%s145 + $0x168] sm:$0xff] %vm774, %v699
      %821 = vst.msk [vmem:[%s145 + $0x170] sm:$0xff] %vm774, %v704
      %822 = vst.msk [vmem:[%s145 + $0x178] sm:$0xff] %vm774, %v707
      %823 = vst.msk [vmem:[%s145 + $0x180] sm:$0xff] %vm774, %v712
      %824 = vst.msk [vmem:[%s145 + $0x188] sm:$0xff] %vm774, %v715
      %825 = vst.msk [vmem:[%s145 + $0x190] sm:$0xff] %vm774, %v720
      %826 = vst.msk [vmem:[%s145 + $0x198] sm:$0xff] %vm774, %v723
      %827 = vst.msk [vmem:[%s145 + $0x1a0] sm:$0xff] %vm774, %v728
      %828 = vst.msk [vmem:[%s145 + $0x1a8] sm:$0xff] %vm774, %v731
      %829 = vst.msk [vmem:[%s145 + $0x1b0] sm:$0xff] %vm774, %v736
      %830 = vst.msk [vmem:[%s145 + $0x1b8] sm:$0xff] %vm774, %v739
      %831 = vst.msk [vmem:[%s145 + $0x1c0] sm:$0xff] %vm774, %v744
      %832 = vst.msk [vmem:[%s145 + $0x1c8] sm:$0xff] %vm774, %v747
      %833 = vst.msk [vmem:[%s145 + $0x1d0] sm:$0xff] %vm774, %v752
      %834 = vst.msk [vmem:[%s145 + $0x1d8] sm:$0xff] %vm774, %v755
      %835 = vst.msk [vmem:[%s145 + $0x1e0] sm:$0xff] %vm774, %v760
      %836 = vst.msk [vmem:[%s145 + $0x1e8] sm:$0xff] %vm774, %v763
      %837 = vst.msk [vmem:[%s145 + $0x1f0] sm:$0xff] %vm774, %v768
      %838 = vst.msk [vmem:[%s145 + $0x1f8] sm:$0xff] %vm774, %v771
      %s839 = smul.u32 64, %s13
      %p840 = scmp.lt.s32.totalorder %s839, 319
      %s841 = scalar_select %p840, %s839, 319
      %s842 = smul.addr %s841, 8
      %s843 = scalar_lea.vmem %s2, %s842
      // Predicated region
      $region29: #{dec_forward.9} parent=27 // pred_check
        %p844 = pneg %p78
      $region30: #{dec_forward.9} parent=27 // pred_check_branch
        %846 = sbr.rel (%p844) target = $region32
      $region31: #{dec_forward.9} parent=27 // pred_region
        %s847 = smul.u32 64, %s13
      $region32: #{dec_forward.9} parent=27 // pred_fallthru
        _
    $region28: #{dec_forward.9} parent=5 // pred_fallthru
      _
    %p848 = scmp.le.s32.totalorder 2, %s8
    // Predicated region
    $region33: #{dec_forward.9} parent=5 // pred_check
      %p849 = pneg %p848
    $region34: #{dec_forward.9} parent=5 // pred_check_branch
      %851 = sbr.rel (%p849) target = $region36
    $region35: #{dec_forward.9} parent=5 // pred_region
      %s852 = ssub.s32 %s8, 2
      // Predicated region
      $region37: #{dec_forward.9} parent=35 // pred_check
        %p853 = pneg %p84
      $region38: #{dec_forward.9} parent=35 // pred_check_branch
        %855 = sbr.rel (%p853) target = $region40
      $region39: #{dec_forward.9} parent=35 // pred_region
        %s856 = smul.u32 64, %s14
        %p857 = scmp.lt.s32.totalorder %s856, 319
        %s858 = scalar_select %p857, %s856, 319
        %s859 = smul.addr %s858, 8
        %s860 = scalar_lea.vmem %s2, %s859
      $region40: #{dec_forward.9} parent=35 // pred_fallthru
        _
    $region36: #{dec_forward.9} parent=5 // pred_fallthru
      _
  $region6: #{dec_forward.9} parent=0 // loop_footer
    %s12 = sadd.s32 1, %s8
  $region7: #{dec_forward.9} parent=0 // loop_footer_branch
    %7 = sbr.rel target = $region3
  $region8: #{dec_forward.9} parent=0 // loop_exit
    _

</llo_original>
